<compile_context>
chip_gen: v7x
topology: tpu7x:2x2x1
jax: 0.10.0
libtpu: 0.0.40
codegen_flags: <defaults>
</compile_context>

<pallas_src>
import functools
import math

import jax
import jax.numpy as jnp
from jax import lax
from jax.experimental import pallas as pl
from jax.experimental.pallas import tpu as pltpu


def make_transformer_kernel(nheads: int, dim_head: int, batch_block: int, seq: int):
    H, Dh = nheads, dim_head
    HD = H * Dh
    inv_sqrt2 = 1.0 / math.sqrt(2.0)

    def layernorm(v, g, b):
        mu = jnp.mean(v, axis=-1, keepdims=True)
        var = jnp.mean((v - mu) ** 2, axis=-1, keepdims=True)
        return (v - mu) * lax.rsqrt(var + 1e-5) * g + b

    def kernel(x_ref, ln1g_ref, ln1b_ref, wqkv_ref, wo_ref, bo_ref,
               ln2g_ref, ln2b_ref, w1_ref, b1_ref, w2_ref, b2_ref, out_ref):
        layer = pl.program_id(1)

        # Layer 0: seed the VMEM-resident carry from the input activations.
        # (Must stay ABOVE the unconditional out_ref read below.)
        @pl.when(layer == 0)
        def _():
            out_ref[...] = x_ref[...]

        D = out_ref.shape[-1]
        M = batch_block * seq
        x = out_ref[...].reshape(M, D)                    # (Bt*N, D) f32 carry

        # ---------------- attention sub-block ----------------
        xn = layernorm(x, ln1g_ref[layer], ln1b_ref[layer])
        # Fused QKV projection: one wide matmul; columns are [q | k | v],
        # head-major within each block; q already scaled by dim_head**-0.5.
        qkv = jnp.dot(xn.astype(jnp.bfloat16), wqkv_ref[layer],
                      preferred_element_type=jnp.float32)         # (M, 3*HD)
        qkvb = qkv.astype(jnp.bfloat16)

        ctx_rows = []
        for b in range(batch_block):                      # static: unrolled
            r0 = b * seq
            head_ctx = []
            for h in range(H):                            # static: unrolled
                c0 = h * Dh
                qh = qkvb[r0:r0 + seq, c0:c0 + Dh]                 # (N, Dh)
                kh = qkvb[r0:r0 + seq, HD + c0:HD + c0 + Dh]
                vh = qkvb[r0:r0 + seq, 2 * HD + c0:2 * HD + c0 + Dh]
                # scores = q @ k^T via contraction on the last dim (no transpose)
                s = lax.dot_general(qh, kh, (((1,), (1,)), ((), ())),
                                    preferred_element_type=jnp.float32)  # (N, N)
                s = s - jnp.max(s, axis=-1, keepdims=True)
                p = jnp.exp(s)
                p = p * pl.reciprocal(jnp.sum(p, axis=-1, keepdims=True),
                                      approx=True)
                head_ctx.append(jnp.dot(p.astype(jnp.bfloat16), vh,
                                        preferred_element_type=jnp.float32))
            ctx_rows.append(head_ctx[0] if H == 1
                            else jnp.concatenate(head_ctx, axis=-1))     # (N, HD)
        ctx = (ctx_rows[0] if batch_block == 1
               else jnp.concatenate(ctx_rows, axis=0))                   # (M, HD)

        # Output projection: single (M, HD) x (HD, D) matmul (head-sum on MXU).
        attn = jnp.dot(ctx.astype(jnp.bfloat16), wo_ref[layer],
                       preferred_element_type=jnp.float32) + bo_ref[layer]
        x1 = x + attn                                     # residual 1

        # ---------------- FFN sub-block ----------------
        xn2 = layernorm(x1, ln2g_ref[layer], ln2b_ref[layer])
        h1 = jnp.dot(xn2.astype(jnp.bfloat16), w1_ref[layer],
                     preferred_element_type=jnp.float32) + b1_ref[layer]
        # exact GELU (nn.GELU default): 0.5 * x * (1 + erf(x / sqrt(2)))
        h1 = 0.5 * h1 * (1.0 + lax.erf(h1 * inv_sqrt2))
        h2 = jnp.dot(h1.astype(jnp.bfloat16), w2_ref[layer],
                     preferred_element_type=jnp.float32) + b2_ref[layer]

        out_ref[...] = (x1 + h2).reshape(batch_block, seq, D)   # residual 2
        # TODO(synk): train-mode nn.Dropout has no deterministic equivalent here;
        # treated as identity (inference semantics).

    return kernel


def _pick_batch_block(B, N):
    # Fill the MXU M dim (target ~128 rows) while keeping >=2 batch blocks
    # when B allows (v7x has 2 TensorCores on the "parallel" axis).
    bt = max(1, min(B, max(1, 128 // max(N, 1))))
    if bt > 1 and B // bt < 2:
        bt = max(1, B // 2)
    while B % bt:
        bt -= 1
    return bt


def transformer_forward(x, sp, *, nheads, dim_head, batch_block=None):
    B, N, D = x.shape
    depth = sp["wqkv"].shape[0]
    bt = _pick_batch_block(B, N) if batch_block is None else batch_block
    nb = B // bt

    kernel = make_transformer_kernel(nheads, dim_head, bt, N)

    def resident(arr):
        # Full stacked weight stays VMEM-resident: constant block index means
        # the DMA is issued once for the whole grid; kernel indexes w_ref[layer].
        nz = (0,) * arr.ndim
        return pl.BlockSpec(arr.shape, lambda b, l, nz=nz: nz)

    in_specs = [
        pl.BlockSpec((bt, N, D), lambda b, l: (b, 0, 0)),   # x (read at layer 0)
        resident(sp["ln1_g"]), resident(sp["ln1_b"]),
        resident(sp["wqkv"]), resident(sp["wo"]), resident(sp["bo"]),
        resident(sp["ln2_g"]), resident(sp["ln2_b"]),
        resident(sp["w1"]), resident(sp["b1"]),
        resident(sp["w2"]), resident(sp["b2"]),
    ]

    return pl.pallas_call(
        kernel,
        out_shape=jax.ShapeDtypeStruct((B, N, D), jnp.float32),
        grid=(nb, depth),                    # layer axis last => carry stays resident
        in_specs=in_specs,
        out_specs=pl.BlockSpec((bt, N, D), lambda b, l: (b, 0, 0)),
        compiler_params=pltpu.CompilerParams(
            dimension_semantics=("parallel", "arbitrary")),
    )(x, sp["ln1_g"], sp["ln1_b"], sp["wqkv"], sp["wo"], sp["bo"],
      sp["ln2_g"], sp["ln2_b"], sp["w1"], sp["b1"], sp["w2"], sp["b2"])


def init_params(key, depth, dim, hidden_dim, nheads, dim_head):
    HD = nheads * dim_head
    scale = 0.02
    params = []
    for layer in range(depth):
        ks = jax.random.split(jax.random.fold_in(key, layer), 8)
        params.append(dict(
            ln1_g=jnp.ones((1, dim), jnp.float32),
            ln1_b=jnp.zeros((1, dim), jnp.float32),
            wq=scale * jax.random.normal(ks[0], (dim, HD), jnp.float32),
            wk=scale * jax.random.normal(ks[1], (dim, HD), jnp.float32),
            wv=scale * jax.random.normal(ks[2], (dim, HD), jnp.float32),
            wo=scale * jax.random.normal(ks[3], (HD, dim), jnp.float32),
            bo=scale * jax.random.normal(ks[4], (1, dim), jnp.float32),
            ln2_g=jnp.ones((1, dim), jnp.float32),
            ln2_b=jnp.zeros((1, dim), jnp.float32),
            w1=scale * jax.random.normal(ks[5], (dim, hidden_dim), jnp.float32),
            b1=scale * jax.random.normal(ks[6], (1, hidden_dim), jnp.float32),
            w2=scale * jax.random.normal(ks[7], (hidden_dim, dim), jnp.float32),
            b2=jnp.zeros((1, dim), jnp.float32),
        ))
    return params


def stack_params(params, nheads, dim_head):
    """Stack per-layer params on a leading layer axis in lane-dense layouts:
      wqkv: (L, D, 3*H*Dh) with columns [q | k | v] (head-major sub-blocks),
            q columns pre-scaled by dim_head**-0.5 (folds the runtime q*z).
      wo:   (L, H*Dh, D).
    Matmul weights cast to bf16 (f32 accumulation in-kernel)."""
    z = dim_head ** (-0.5)

    def stk(name):
        return jnp.stack([p[name] for p in params], axis=0)

    wqkv = jnp.concatenate([stk("wq") * z, stk("wk"), stk("wv")], axis=-1)
    bf = jnp.bfloat16
    return dict(
        ln1_g=stk("ln1_g"), ln1_b=stk("ln1_b"),
        wqkv=wqkv.astype(bf),
        wo=stk("wo").astype(bf), bo=stk("bo"),
        ln2_g=stk("ln2_g"), ln2_b=stk("ln2_b"),
        w1=stk("w1").astype(bf), b1=stk("b1"),
        w2=stk("w2").astype(bf), b2=stk("b2"),
    )


if __name__ == "__main__":
    # Transformer(depth=2, dim=32, hidden_dim=64, nheads=2, dim_head=16,
    #             dropout=0.1, activation='gelu')  -- dropout = identity here.
    depth, dim, hidden_dim, nheads, dim_head = 2, 32, 64, 2, 16
    B, N = 2, 8

    key = jax.random.PRNGKey(0)
    x = jax.random.normal(jax.random.fold_in(key, 100), (B, N, dim), jnp.float32)
    params = init_params(key, depth, dim, hidden_dim, nheads, dim_head)
    sp = stack_params(params, nheads, dim_head)

    fwd = jax.jit(functools.partial(transformer_forward,
                                    nheads=nheads, dim_head=dim_head))
    y = fwd(x, sp)
    jax.block_until_ready(y)
    assert y.shape == (B, N, dim)
    print("KERNEL_OK")
</pallas_src>

<mosaic_0001>
module attributes {stable_mosaic.version = 11 : i64} {
  func.func @kernel(%arg0: i32, %arg1: i32, %arg2: memref<1x8x32xf32, #tpu.memory_space<vmem>>, %arg3: memref<2x1x32xf32, #tpu.memory_space<vmem>>, %arg4: memref<2x1x32xf32, #tpu.memory_space<vmem>>, %arg5: memref<2x32x96xbf16, #tpu.memory_space<vmem>>, %arg6: memref<2x32x32xbf16, #tpu.memory_space<vmem>>, %arg7: memref<2x1x32xf32, #tpu.memory_space<vmem>>, %arg8: memref<2x1x32xf32, #tpu.memory_space<vmem>>, %arg9: memref<2x1x32xf32, #tpu.memory_space<vmem>>, %arg10: memref<2x32x64xbf16, #tpu.memory_space<vmem>>, %arg11: memref<2x1x64xf32, #tpu.memory_space<vmem>>, %arg12: memref<2x64x32xbf16, #tpu.memory_space<vmem>>, %arg13: memref<2x1x32xf32, #tpu.memory_space<vmem>>, %arg14: memref<1x8x32xf32, #tpu.memory_space<vmem>>) attributes {dimension_semantics = [#tpu.dimension_semantics<parallel>, #tpu.dimension_semantics<arbitrary>], iteration_bounds = array<i64: 2, 2>, scalar_prefetch = 0 : i64, scratch_operands = 0 : i64, tpu.core_type = #tpu.core_type<tc>, window_params = [{transform_indices = @transform_0, window_bounds = array<i64: 1, 8, 32>}, {pipeline_mode = #tpu.pipeline_mode<synchronous>, transform_indices = @transform_1, window_bounds = array<i64: 2, 1, 32>}, {pipeline_mode = #tpu.pipeline_mode<synchronous>, transform_indices = @transform_2, window_bounds = array<i64: 2, 1, 32>}, {pipeline_mode = #tpu.pipeline_mode<synchronous>, transform_indices = @transform_3, window_bounds = array<i64: 2, 32, 96>}, {pipeline_mode = #tpu.pipeline_mode<synchronous>, transform_indices = @transform_4, window_bounds = array<i64: 2, 32, 32>}, {pipeline_mode = #tpu.pipeline_mode<synchronous>, transform_indices = @transform_5, window_bounds = array<i64: 2, 1, 32>}, {pipeline_mode = #tpu.pipeline_mode<synchronous>, transform_indices = @transform_6, window_bounds = array<i64: 2, 1, 32>}, {pipeline_mode = #tpu.pipeline_mode<synchronous>, transform_indices = @transform_7, window_bounds = array<i64: 2, 1, 32>}, {pipeline_mode = #tpu.pipeline_mode<synchronous>, transform_indices = @transform_8, window_bounds = array<i64: 2, 32, 64>}, {pipeline_mode = #tpu.pipeline_mode<synchronous>, transform_indices = @transform_9, window_bounds = array<i64: 2, 1, 64>}, {pipeline_mode = #tpu.pipeline_mode<synchronous>, transform_indices = @transform_10, window_bounds = array<i64: 2, 64, 32>}, {pipeline_mode = #tpu.pipeline_mode<synchronous>, transform_indices = @transform_11, window_bounds = array<i64: 2, 1, 32>}, {transform_indices = @transform_12, window_bounds = array<i64: 1, 8, 32>}]} {
    %c0_i32 = arith.constant 0 : i32
    %0 = arith.cmpi eq, %arg1, %c0_i32 : i32
    %1 = arith.extui %0 : i1 to i32
    %c0_i32_0 = arith.constant 0 : i32
    %2 = arith.cmpi ne, %1, %c0_i32_0 : i32
    scf.if %2 {
      %c0_52 = arith.constant 0 : index
      %c0_53 = arith.constant 0 : index
      %c0_54 = arith.constant 0 : index
      %142 = vector.load %arg2[%c0_52, %c0_53, %c0_54] : memref<1x8x32xf32, #tpu.memory_space<vmem>>, vector<1x8x32xf32>
      %c0_55 = arith.constant 0 : index
      %c0_56 = arith.constant 0 : index
      %c0_57 = arith.constant 0 : index
      %143 = vector.load %arg14[%c0_55, %c0_56, %c0_57] : memref<1x8x32xf32, #tpu.memory_space<vmem>>, vector<1x8x32xf32>
      tpu.vector_store %arg14[%c0_55, %c0_56, %c0_57], %142 {strides = array<i32>} : memref<1x8x32xf32, #tpu.memory_space<vmem>>, vector<1x8x32xf32>,
    } else {
    }
    %c0 = arith.constant 0 : index
    %c0_1 = arith.constant 0 : index
    %c0_2 = arith.constant 0 : index
    %3 = vector.load %arg14[%c0, %c0_1, %c0_2] : memref<1x8x32xf32, #tpu.memory_space<vmem>>, vector<1x8x32xf32>
    %4 = vector.shape_cast %3 : vector<1x8x32xf32> to vector<8x32xf32>
    %5 = arith.index_cast %arg1 : i32 to index
    %c0_3 = arith.constant 0 : index
    %c0_4 = arith.constant 0 : index
    %6 = vector.load %arg3[%5, %c0_3, %c0_4] : memref<2x1x32xf32, #tpu.memory_space<vmem>>, vector<1x1x32xf32>
    %7 = vector.shape_cast %6 : vector<1x1x32xf32> to vector<1x32xf32>
    %8 = arith.index_cast %arg1 : i32 to index
    %c0_5 = arith.constant 0 : index
    %c0_6 = arith.constant 0 : index
    %9 = vector.load %arg4[%8, %c0_5, %c0_6] : memref<2x1x32xf32, #tpu.memory_space<vmem>>, vector<1x1x32xf32>
    %10 = vector.shape_cast %9 : vector<1x1x32xf32> to vector<1x32xf32>
    %cst = arith.constant dense<0.000000e+00> : vector<8xf32>
    %11 = vector.multi_reduction <add>, %4, %cst [1] : vector<8x32xf32> to vector<8xf32>
    %12 = vector.shape_cast %11 : vector<8xf32> to vector<8x1xf32>
    %cst_7 = arith.constant 3.200000e+01 : f32
    %13 = vector.broadcast %cst_7 : f32 to vector<8x1xf32>
    %14 = arith.divf %12, %13 : vector<8x1xf32>
    %15 = vector.broadcast %14 : vector<8x1xf32> to vector<8x32xf32>
    %16 = arith.subf %4, %15 : vector<8x32xf32>
    %17 = arith.mulf %16, %16 : vector<8x32xf32>
    %cst_8 = arith.constant dense<0.000000e+00> : vector<8xf32>
    %18 = vector.multi_reduction <add>, %17, %cst_8 [1] : vector<8x32xf32> to vector<8xf32>
    %19 = vector.shape_cast %18 : vector<8xf32> to vector<8x1xf32>
    %cst_9 = arith.constant 3.200000e+01 : f32
    %20 = vector.broadcast %cst_9 : f32 to vector<8x1xf32>
    %21 = arith.divf %19, %20 : vector<8x1xf32>
    %22 = vector.broadcast %14 : vector<8x1xf32> to vector<8x32xf32>
    %23 = arith.subf %4, %22 : vector<8x32xf32>
    %cst_10 = arith.constant 9.99999974E-6 : f32
    %24 = vector.broadcast %cst_10 : f32 to vector<8x1xf32>
    %25 = arith.addf %21, %24 : vector<8x1xf32>
    %26 = math.rsqrt %25 : vector<8x1xf32>
    %27 = vector.broadcast %26 : vector<8x1xf32> to vector<8x32xf32>
    %28 = arith.mulf %23, %27 : vector<8x32xf32>
    %29 = vector.broadcast %7 : vector<1x32xf32> to vector<8x32xf32>
    %30 = arith.mulf %28, %29 : vector<8x32xf32>
    %31 = vector.broadcast %10 : vector<1x32xf32> to vector<8x32xf32>
    %32 = arith.addf %30, %31 : vector<8x32xf32>
    %33 = arith.truncf %32 : vector<8x32xf32> to vector<8x32xbf16>
    %34 = arith.index_cast %arg1 : i32 to index
    %c0_11 = arith.constant 0 : index
    %c0_12 = arith.constant 0 : index
    %35 = vector.load %arg5[%34, %c0_11, %c0_12] : memref<2x32x96xbf16, #tpu.memory_space<vmem>>, vector<1x32x96xbf16>
    %36 = vector.shape_cast %35 : vector<1x32x96xbf16> to vector<32x96xbf16>
    %cst_13 = arith.constant dense<0.000000e+00> : vector<8x96xf32>
    %37 = tpu.matmul %33, %36, %cst_13 {dimension_numbers = #tpu.dot_dimension_numbers<[1], [0], [0], [1], [0, 0, 1, 1], [], []>} : vector<8x32xbf16>, vector<32x96xbf16>, vector<8x96xf32> -> vector<8x96xf32>
    %38 = arith.truncf %37 : vector<8x96xf32> to vector<8x96xbf16>
    %39 = vector.extract_strided_slice %38 {offsets = [0, 0], sizes = [8, 16], strides = [1, 1]} : vector<8x96xbf16> to vector<8x16xbf16>
    %40 = vector.extract_strided_slice %38 {offsets = [0, 32], sizes = [8, 16], strides = [1, 1]} : vector<8x96xbf16> to vector<8x16xbf16>
    %41 = vector.extract_strided_slice %38 {offsets = [0, 64], sizes = [8, 16], strides = [1, 1]} : vector<8x96xbf16> to vector<8x16xbf16>
    %cst_14 = arith.constant dense<0.000000e+00> : vector<8x8xf32>
    %42 = tpu.matmul %39, %40, %cst_14 {dimension_numbers = #tpu.dot_dimension_numbers<[1], [1], [0], [0], [0, 0, 1, 0], [], []>} : vector<8x16xbf16>, vector<8x16xbf16>, vector<8x8xf32> -> vector<8x8xf32>
    %cst_15 = arith.constant dense<0xFF800000> : vector<8xf32>
    %43 = vector.multi_reduction <maximumf>, %42, %cst_15 [1] : vector<8x8xf32> to vector<8xf32>
    %44 = vector.shape_cast %43 : vector<8xf32> to vector<8x1xf32>
    %45 = vector.broadcast %44 : vector<8x1xf32> to vector<8x8xf32>
    %46 = arith.subf %42, %45 : vector<8x8xf32>
    %47 = math.exp %46 : vector<8x8xf32>
    %cst_16 = arith.constant dense<0.000000e+00> : vector<8xf32>
    %48 = vector.multi_reduction <add>, %47, %cst_16 [1] : vector<8x8xf32> to vector<8xf32>
    %49 = vector.shape_cast %48 : vector<8xf32> to vector<8x1xf32>
    %50 = tpu.reciprocal %49 {approx = true} : vector<8x1xf32> -> vector<8x1xf32>
    %51 = vector.broadcast %50 : vector<8x1xf32> to vector<8x8xf32>
    %52 = arith.mulf %47, %51 : vector<8x8xf32>
    %53 = arith.truncf %52 : vector<8x8xf32> to vector<8x8xbf16>
    %cst_17 = arith.constant dense<0.000000e+00> : vector<8x16xf32>
    %54 = tpu.matmul %53, %41, %cst_17 {dimension_numbers = #tpu.dot_dimension_numbers<[1], [0], [0], [1], [0, 0, 1, 1], [], []>} : vector<8x8xbf16>, vector<8x16xbf16>, vector<8x16xf32> -> vector<8x16xf32>
    %55 = vector.extract_strided_slice %38 {offsets = [0, 16], sizes = [8, 16], strides = [1, 1]} : vector<8x96xbf16> to vector<8x16xbf16>
    %56 = vector.extract_strided_slice %38 {offsets = [0, 48], sizes = [8, 16], strides = [1, 1]} : vector<8x96xbf16> to vector<8x16xbf16>
    %57 = vector.extract_strided_slice %38 {offsets = [0, 80], sizes = [8, 16], strides = [1, 1]} : vector<8x96xbf16> to vector<8x16xbf16>
    %cst_18 = arith.constant dense<0.000000e+00> : vector<8x8xf32>
    %58 = tpu.matmul %55, %56, %cst_18 {dimension_numbers = #tpu.dot_dimension_numbers<[1], [1], [0], [0], [0, 0, 1, 0], [], []>} : vector<8x16xbf16>, vector<8x16xbf16>, vector<8x8xf32> -> vector<8x8xf32>
    %cst_19 = arith.constant dense<0xFF800000> : vector<8xf32>
    %59 = vector.multi_reduction <maximumf>, %58, %cst_19 [1] : vector<8x8xf32> to vector<8xf32>
    %60 = vector.shape_cast %59 : vector<8xf32> to vector<8x1xf32>
    %61 = vector.broadcast %60 : vector<8x1xf32> to vector<8x8xf32>
    %62 = arith.subf %58, %61 : vector<8x8xf32>
    %63 = math.exp %62 : vector<8x8xf32>
    %cst_20 = arith.constant dense<0.000000e+00> : vector<8xf32>
    %64 = vector.multi_reduction <add>, %63, %cst_20 [1] : vector<8x8xf32> to vector<8xf32>
    %65 = vector.shape_cast %64 : vector<8xf32> to vector<8x1xf32>
    %66 = tpu.reciprocal %65 {approx = true} : vector<8x1xf32> -> vector<8x1xf32>
    %67 = vector.broadcast %66 : vector<8x1xf32> to vector<8x8xf32>
    %68 = arith.mulf %63, %67 : vector<8x8xf32>
    %69 = arith.truncf %68 : vector<8x8xf32> to vector<8x8xbf16>
    %cst_21 = arith.constant dense<0.000000e+00> : vector<8x16xf32>
    %70 = tpu.matmul %69, %57, %cst_21 {dimension_numbers = #tpu.dot_dimension_numbers<[1], [0], [0], [1], [0, 0, 1, 1], [], []>} : vector<8x8xbf16>, vector<8x16xbf16>, vector<8x16xf32> -> vector<8x16xf32>
    %71 = tpu.concatenate %54, %70 in 1 : vector<8x16xf32>, vector<8x16xf32> -> vector<8x32xf32>
    %72 = arith.truncf %71 : vector<8x32xf32> to vector<8x32xbf16>
    %73 = arith.index_cast %arg1 : i32 to index
    %c0_22 = arith.constant 0 : index
    %c0_23 = arith.constant 0 : index
    %74 = vector.load %arg6[%73, %c0_22, %c0_23] : memref<2x32x32xbf16, #tpu.memory_space<vmem>>, vector<1x32x32xbf16>
    %75 = vector.shape_cast %74 : vector<1x32x32xbf16> to vector<32x32xbf16>
    %cst_24 = arith.constant dense<0.000000e+00> : vector<8x32xf32>
    %76 = tpu.matmul %72, %75, %cst_24 {dimension_numbers = #tpu.dot_dimension_numbers<[1], [0], [0], [1], [0, 0, 1, 1], [], []>} : vector<8x32xbf16>, vector<32x32xbf16>, vector<8x32xf32> -> vector<8x32xf32>
    %77 = arith.index_cast %arg1 : i32 to index
    %c0_25 = arith.constant 0 : index
    %c0_26 = arith.constant 0 : index
    %78 = vector.load %arg7[%77, %c0_25, %c0_26] : memref<2x1x32xf32, #tpu.memory_space<vmem>>, vector<1x1x32xf32>
    %79 = vector.shape_cast %78 : vector<1x1x32xf32> to vector<1x32xf32>
    %80 = vector.broadcast %79 : vector<1x32xf32> to vector<8x32xf32>
    %81 = arith.addf %76, %80 : vector<8x32xf32>
    %82 = arith.addf %4, %81 : vector<8x32xf32>
    %83 = arith.index_cast %arg1 : i32 to index
    %c0_27 = arith.constant 0 : index
    %c0_28 = arith.constant 0 : index
    %84 = vector.load %arg8[%83, %c0_27, %c0_28] : memref<2x1x32xf32, #tpu.memory_space<vmem>>, vector<1x1x32xf32>
    %85 = vector.shape_cast %84 : vector<1x1x32xf32> to vector<1x32xf32>
    %86 = arith.index_cast %arg1 : i32 to index
    %c0_29 = arith.constant 0 : index
    %c0_30 = arith.constant 0 : index
    %87 = vector.load %arg9[%86, %c0_29, %c0_30] : memref<2x1x32xf32, #tpu.memory_space<vmem>>, vector<1x1x32xf32>
    %88 = vector.shape_cast %87 : vector<1x1x32xf32> to vector<1x32xf32>
    %cst_31 = arith.constant dense<0.000000e+00> : vector<8xf32>
    %89 = vector.multi_reduction <add>, %82, %cst_31 [1] : vector<8x32xf32> to vector<8xf32>
    %90 = vector.shape_cast %89 : vector<8xf32> to vector<8x1xf32>
    %cst_32 = arith.constant 3.200000e+01 : f32
    %91 = vector.broadcast %cst_32 : f32 to vector<8x1xf32>
    %92 = arith.divf %90, %91 : vector<8x1xf32>
    %93 = vector.broadcast %92 : vector<8x1xf32> to vector<8x32xf32>
    %94 = arith.subf %82, %93 : vector<8x32xf32>
    %95 = arith.mulf %94, %94 : vector<8x32xf32>
    %cst_33 = arith.constant dense<0.000000e+00> : vector<8xf32>
    %96 = vector.multi_reduction <add>, %95, %cst_33 [1] : vector<8x32xf32> to vector<8xf32>
    %97 = vector.shape_cast %96 : vector<8xf32> to vector<8x1xf32>
    %cst_34 = arith.constant 3.200000e+01 : f32
    %98 = vector.broadcast %cst_34 : f32 to vector<8x1xf32>
    %99 = arith.divf %97, %98 : vector<8x1xf32>
    %100 = vector.broadcast %92 : vector<8x1xf32> to vector<8x32xf32>
    %101 = arith.subf %82, %100 : vector<8x32xf32>
    %cst_35 = arith.constant 9.99999974E-6 : f32
    %102 = vector.broadcast %cst_35 : f32 to vector<8x1xf32>
    %103 = arith.addf %99, %102 : vector<8x1xf32>
    %104 = math.rsqrt %103 : vector<8x1xf32>
    %105 = vector.broadcast %104 : vector<8x1xf32> to vector<8x32xf32>
    %106 = arith.mulf %101, %105 : vector<8x32xf32>
    %107 = vector.broadcast %85 : vector<1x32xf32> to vector<8x32xf32>
    %108 = arith.mulf %106, %107 : vector<8x32xf32>
    %109 = vector.broadcast %88 : vector<1x32xf32> to vector<8x32xf32>
    %110 = arith.addf %108, %109 : vector<8x32xf32>
    %111 = arith.truncf %110 : vector<8x32xf32> to vector<8x32xbf16>
    %112 = arith.index_cast %arg1 : i32 to index
    %c0_36 = arith.constant 0 : index
    %c0_37 = arith.constant 0 : index
    %113 = vector.load %arg10[%112, %c0_36, %c0_37] : memref<2x32x64xbf16, #tpu.memory_space<vmem>>, vector<1x32x64xbf16>
    %114 = vector.shape_cast %113 : vector<1x32x64xbf16> to vector<32x64xbf16>
    %cst_38 = arith.constant dense<0.000000e+00> : vector<8x64xf32>
    %115 = tpu.matmul %111, %114, %cst_38 {dimension_numbers = #tpu.dot_dimension_numbers<[1], [0], [0], [1], [0, 0, 1, 1], [], []>} : vector<8x32xbf16>, vector<32x64xbf16>, vector<8x64xf32> -> vector<8x64xf32>
    %116 = arith.index_cast %arg1 : i32 to index
    %c0_39 = arith.constant 0 : index
    %c0_40 = arith.constant 0 : index
    %117 = vector.load %arg11[%116, %c0_39, %c0_40] : memref<2x1x64xf32, #tpu.memory_space<vmem>>, vector<1x1x64xf32>
    %118 = vector.shape_cast %117 : vector<1x1x64xf32> to vector<1x64xf32>
    %119 = vector.broadcast %118 : vector<1x64xf32> to vector<8x64xf32>
    %120 = arith.addf %115, %119 : vector<8x64xf32>
    %cst_41 = arith.constant 5.000000e-01 : f32
    %121 = vector.broadcast %cst_41 : f32 to vector<8x64xf32>
    %122 = arith.mulf %121, %120 : vector<8x64xf32>
    %cst_42 = arith.constant 0.707106769 : f32
    %123 = vector.broadcast %cst_42 : f32 to vector<8x64xf32>
    %124 = arith.mulf %120, %123 : vector<8x64xf32>
    %125 = math.erf %124 : vector<8x64xf32>
    %cst_43 = arith.constant 1.000000e+00 : f32
    %126 = vector.broadcast %cst_43 : f32 to vector<8x64xf32>
    %127 = arith.addf %126, %125 : vector<8x64xf32>
    %128 = arith.mulf %122, %127 : vector<8x64xf32>
    %129 = arith.truncf %128 : vector<8x64xf32> to vector<8x64xbf16>
    %130 = arith.index_cast %arg1 : i32 to index
    %c0_44 = arith.constant 0 : index
    %c0_45 = arith.constant 0 : index
    %131 = vector.load %arg12[%130, %c0_44, %c0_45] : memref<2x64x32xbf16, #tpu.memory_space<vmem>>, vector<1x64x32xbf16>
    %132 = vector.shape_cast %131 : vector<1x64x32xbf16> to vector<64x32xbf16>
    %cst_46 = arith.constant dense<0.000000e+00> : vector<8x32xf32>
    %133 = tpu.matmul %129, %132, %cst_46 {dimension_numbers = #tpu.dot_dimension_numbers<[1], [0], [0], [1], [0, 0, 1, 1], [], []>} : vector<8x64xbf16>, vector<64x32xbf16>, vector<8x32xf32> -> vector<8x32xf32>
    %134 = arith.index_cast %arg1 : i32 to index
    %c0_47 = arith.constant 0 : index
    %c0_48 = arith.constant 0 : index
    %135 = vector.load %arg13[%134, %c0_47, %c0_48] : memref<2x1x32xf32, #tpu.memory_space<vmem>>, vector<1x1x32xf32>
    %136 = vector.shape_cast %135 : vector<1x1x32xf32> to vector<1x32xf32>
    %137 = vector.broadcast %136 : vector<1x32xf32> to vector<8x32xf32>
    %138 = arith.addf %133, %137 : vector<8x32xf32>
    %139 = arith.addf %82, %138 : vector<8x32xf32>
    %140 = vector.shape_cast %139 : vector<8x32xf32> to vector<1x8x32xf32>
    %c0_49 = arith.constant 0 : index
    %c0_50 = arith.constant 0 : index
    %c0_51 = arith.constant 0 : index
    %141 = vector.load %arg14[%c0_49, %c0_50, %c0_51] : memref<1x8x32xf32, #tpu.memory_space<vmem>>, vector<1x8x32xf32>
    tpu.vector_store %arg14[%c0_49, %c0_50, %c0_51], %140 {strides = array<i32>} : memref<1x8x32xf32, #tpu.memory_space<vmem>>, vector<1x8x32xf32>,
    return
  }
  func.func @transform_0(%arg0: i32, %arg1: i32) -> (i32, i32, i32) {
    %c0_i32 = arith.constant 0 : i32
    %c0_i32_0 = arith.constant 0 : i32
    %c0_i32_1 = arith.constant 0 : i32
    return %arg0, %c0_i32, %c0_i32_0 : i32, i32, i32
  }
  func.func @transform_1(%arg0: i32, %arg1: i32) -> (i32, i32, i32) {
    %c0_i32 = arith.constant 0 : i32
    %c0_i32_0 = arith.constant 0 : i32
    %c0_i32_1 = arith.constant 0 : i32
    %c0_i32_2 = arith.constant 0 : i32
    return %c0_i32, %c0_i32_0, %c0_i32_1 : i32, i32, i32
  }
  func.func @transform_2(%arg0: i32, %arg1: i32) -> (i32, i32, i32) {
    %c0_i32 = arith.constant 0 : i32
    %c0_i32_0 = arith.constant 0 : i32
    %c0_i32_1 = arith.constant 0 : i32
    %c0_i32_2 = arith.constant 0 : i32
    return %c0_i32, %c0_i32_0, %c0_i32_1 : i32, i32, i32
  }
  func.func @transform_3(%arg0: i32, %arg1: i32) -> (i32, i32, i32) {
    %c0_i32 = arith.constant 0 : i32
    %c0_i32_0 = arith.constant 0 : i32
    %c0_i32_1 = arith.constant 0 : i32
    %c0_i32_2 = arith.constant 0 : i32
    return %c0_i32, %c0_i32_0, %c0_i32_1 : i32, i32, i32
  }
  func.func @transform_4(%arg0: i32, %arg1: i32) -> (i32, i32, i32) {
    %c0_i32 = arith.constant 0 : i32
    %c0_i32_0 = arith.constant 0 : i32
    %c0_i32_1 = arith.constant 0 : i32
    %c0_i32_2 = arith.constant 0 : i32
    return %c0_i32, %c0_i32_0, %c0_i32_1 : i32, i32, i32
  }
  func.func @transform_5(%arg0: i32, %arg1: i32) -> (i32, i32, i32) {
    %c0_i32 = arith.constant 0 : i32
    %c0_i32_0 = arith.constant 0 : i32
    %c0_i32_1 = arith.constant 0 : i32
    %c0_i32_2 = arith.constant 0 : i32
    return %c0_i32, %c0_i32_0, %c0_i32_1 : i32, i32, i32
  }
  func.func @transform_6(%arg0: i32, %arg1: i32) -> (i32, i32, i32) {
    %c0_i32 = arith.constant 0 : i32
    %c0_i32_0 = arith.constant 0 : i32
    %c0_i32_1 = arith.constant 0 : i32
    %c0_i32_2 = arith.constant 0 : i32
    return %c0_i32, %c0_i32_0, %c0_i32_1 : i32, i32, i32
  }
  func.func @transform_7(%arg0: i32, %arg1: i32) -> (i32, i32, i32) {
    %c0_i32 = arith.constant 0 : i32
    %c0_i32_0 = arith.constant 0 : i32
    %c0_i32_1 = arith.constant 0 : i32
    %c0_i32_2 = arith.constant 0 : i32
    return %c0_i32, %c0_i32_0, %c0_i32_1 : i32, i32, i32
  }
  func.func @transform_8(%arg0: i32, %arg1: i32) -> (i32, i32, i32) {
    %c0_i32 = arith.constant 0 : i32
    %c0_i32_0 = arith.constant 0 : i32
    %c0_i32_1 = arith.constant 0 : i32
    %c0_i32_2 = arith.constant 0 : i32
    return %c0_i32, %c0_i32_0, %c0_i32_1 : i32, i32, i32
  }
  func.func @transform_9(%arg0: i32, %arg1: i32) -> (i32, i32, i32) {
    %c0_i32 = arith.constant 0 : i32
    %c0_i32_0 = arith.constant 0 : i32
    %c0_i32_1 = arith.constant 0 : i32
    %c0_i32_2 = arith.constant 0 : i32
    return %c0_i32, %c0_i32_0, %c0_i32_1 : i32, i32, i32
  }
  func.func @transform_10(%arg0: i32, %arg1: i32) -> (i32, i32, i32) {
    %c0_i32 = arith.constant 0 : i32
    %c0_i32_0 = arith.constant 0 : i32
    %c0_i32_1 = arith.constant 0 : i32
    %c0_i32_2 = arith.constant 0 : i32
    return %c0_i32, %c0_i32_0, %c0_i32_1 : i32, i32, i32
  }
  func.func @transform_11(%arg0: i32, %arg1: i32) -> (i32, i32, i32) {
    %c0_i32 = arith.constant 0 : i32
    %c0_i32_0 = arith.constant 0 : i32
    %c0_i32_1 = arith.constant 0 : i32
    %c0_i32_2 = arith.constant 0 : i32
    return %c0_i32, %c0_i32_0, %c0_i32_1 : i32, i32, i32
  }
  func.func @transform_12(%arg0: i32, %arg1: i32) -> (i32, i32, i32) {
    %c0_i32 = arith.constant 0 : i32
    %c0_i32_0 = arith.constant 0 : i32
    %c0_i32_1 = arith.constant 0 : i32
    return %arg0, %c0_i32, %c0_i32_0 : i32, i32, i32
  }
}

</mosaic_0001>

<llo_original>
// kernel: transformer_forward.1
$region0: #{transformer_forward.1}
  #allocation0 [shape = 'u32[]', space=smem, size = 0x4, offset = 0x4, fixed_abs, tag = 'smem constant byte address 0x4 - core index']
  #allocation1 [shape = 'u32[144,128]{1,0:T(1,128)}', space=vmem, size = 0x12000, scoped, tag = 'internal scratch']
  %s0 = inlined_call_operand.hbm [shape: f32[2,8,32], index: 0, kind: input, shape index: {}]
  %s1 = inlined_call_operand.vmem [shape: f32[2,1,32], index: 1, kind: input, shape index: {}]
  %s2 = inlined_call_operand.hbm [shape: f32[2,1,32], index: 2, kind: input, shape index: {}]
  %s3 = inlined_call_operand.vmem [shape: bf16[2,32,96], index: 3, kind: input, shape index: {}]
  %s4 = inlined_call_operand.vmem [shape: bf16[2,32,32], index: 4, kind: input, shape index: {}]
  %s5 = inlined_call_operand.hbm [shape: f32[2,1,32], index: 5, kind: input, shape index: {}]
  %s6 = inlined_call_operand.hbm [shape: f32[2,1,32], index: 6, kind: input, shape index: {}]
  %s7 = inlined_call_operand.hbm [shape: f32[2,1,32], index: 7, kind: input, shape index: {}]
  %s8 = inlined_call_operand.vmem [shape: bf16[2,32,64], index: 8, kind: input, shape index: {}]
  %s9 = inlined_call_operand.hbm [shape: f32[2,1,64], index: 9, kind: input, shape index: {}]
  %s10 = inlined_call_operand.vmem [shape: bf16[2,64,32], index: 10, kind: input, shape index: {}]
  %s11 = inlined_call_operand.hbm [shape: f32[2,1,32], index: 11, kind: input, shape index: {}]
  %s12 = inlined_call_operand.hbm [shape: f32[2,8,32], index: 12, kind: output, shape index: {}]
  %s13 = sld [smem:[#allocation0]]
  $region113: #{transformer_forward.1} parent=0
    _
  %s15 = ssub.s32 1, %s13
  %s16 = scalar_select 0, %s15, %s13
  $region1: #{transformer_forward.1} parent=0
    #allocation2 [shape = 'u8[8192]{0}', space=vmem, size = 0x2000, scoped, tag = 'input window, operand 0']
    #allocation3 [shape = 's32[2]{0}', space=sflag, size = 0x8, scoped, tag = 'scoped memory for transformer_forward.1']
    #allocation4 [shape = 's32[2]{0}', space=sflag, size = 0x8, scoped, tag = 'scoped memory for transformer_forward.1']
    #allocation5 [shape = 'u8[1024]{0}', space=vmem, size = 0x400, scoped, tag = 'input window, operand 2, single buffered']
    #allocation6 [shape = 's32[1]{0}', space=sflag, size = 0x4, scoped, tag = 'scoped memory for transformer_forward.1']
    #allocation7 [shape = 'u8[1024]{0}', space=vmem, size = 0x400, scoped, tag = 'input window, operand 5, single buffered']
    #allocation8 [shape = 'u8[1024]{0}', space=vmem, size = 0x400, scoped, tag = 'input window, operand 6, single buffered']
    #allocation9 [shape = 's32[1]{0}', space=sflag, size = 0x4, scoped, tag = 'scoped memory for transformer_forward.1']
    #allocation10 [shape = 'u8[1024]{0}', space=vmem, size = 0x400, scoped, tag = 'input window, operand 7, single buffered']
    #allocation11 [shape = 'u8[1024]{0}', space=vmem, size = 0x400, scoped, tag = 'input window, operand 9, single buffered']
    #allocation12 [shape = 's32[1]{0}', space=sflag, size = 0x4, scoped, tag = 'scoped memory for transformer_forward.1']
    #allocation13 [shape = 'u8[1024]{0}', space=vmem, size = 0x400, scoped, tag = 'input window, operand 11, single buffered']
    #allocation14 [shape = 'u8[8192]{0}', space=vmem, size = 0x2000, scoped, tag = 'output window, operand 0']
    %17 = vsyncpa [#allocation3], 0
    %s18 = scalar_lea.sflag [#allocation3], 1
    %19 = vsyncpa %s18, 0
    %20 = vsyncpa [#allocation6], 0
    %21 = vsyncpa [#allocation9], 0
    %22 = vsyncpa [#allocation12], 0
    %23 = vsyncpa [#allocation4], 0
    %s24 = scalar_lea.sflag [#allocation4], 1
    %25 = vsyncpa %s24, 0
    loop: start=0, step=1, limit=6
    $region2: #{transformer_forward.1} parent=1 // loop_pre_header
      _
    $region3: #{transformer_forward.1} parent=1 // loop_header
      %s27 = sphi 0, %s31
      %p28 = scmp.ge.s32.totalorder %s27, 6
      %s34 = sphi 0, %s46
      %s35 = sphi 0, %s42
      %s36 = sphi 0, %s34
      %s37 = sphi 0, %s35
      %s38 = sphi 0, %s36
      %s39 = sphi 0, %s37
      %s49 = sphi 0, %s51
      %s52 = sphi 0, %s49
      %s53 = sphi 0, %s52
      %s69 = sphi 0, %s53
      %s73 = sphi 0, %s73
      %s75 = sphi 0, %s73
      %s76 = sphi 0, %s75
      %s90 = sphi 0, %s76
      %s94 = sphi 0, %s94
      %s96 = sphi 0, %s94
      %s97 = sphi 0, %s96
      %s111 = sphi 0, %s97
      %s115 = sphi 0, %s115
      %s117 = sphi 0, %s115
      %s118 = sphi 0, %s117
      %s132 = sphi 0, %s118
      %s136 = sphi 0, %s136
      %s138 = sphi 0, %s136
      %s139 = sphi 0, %s138
      %s153 = sphi 0, %s139
      %s157 = sphi 0, %s157
      %s159 = sphi 0, %s157
      %s160 = sphi 0, %s159
      %s174 = sphi 0, %s160
      %s178 = sphi 0, %s178
      %s180 = sphi 0, %s178
      %s181 = sphi 0, %s180
      %s195 = sphi 0, %s181
      %s199 = sphi 0, %s199
      %s201 = sphi 0, %s199
      %s202 = sphi 0, %s201
      %s216 = sphi 0, %s202
      %s220 = sphi 0, %s220
      %s222 = sphi 0, %s220
      %s223 = sphi 0, %s222
      %s237 = sphi 0, %s223
      %s241 = sphi 0, %s241
      %s243 = sphi 0, %s241
      %s244 = sphi 0, %s243
      %s258 = sphi 0, %s244
      %s262 = sphi 0, %s262
      %s264 = sphi 0, %s262
      %s265 = sphi 0, %s264
      %s279 = sphi 0, %s265
      %s283 = sphi 0, %s283
      %s285 = sphi 0, %s283
      %s286 = sphi 0, %s285
      %s300 = sphi 0, %s286
      %s306 = sphi 0, %s308
      %s309 = sphi 0, %s306
      %s310 = sphi 0, %s309
      %s326 = sphi 0, %s310
    $region4: #{transformer_forward.1} parent=1 // loop_header_branch
      %30 = sbr.rel (%p28) target = $region8
    $region5: #{transformer_forward.1} parent=1 // loop_body
      %s32 = ssub.s32 %s27, 1
      %s33 = ssub.s32 %s27, 2
      %s40 = sadd.s32 1, %s35
      %p41 = scmp.ge.s32.totalorder %s40, 2
      %s42 = scalar_select %p41, 0, %s40
      %s43 = sadd.s32 1, %s34
      %s44 = scalar_select %p41, %s43, %s34
      %p45 = scmp.ge.s32.totalorder %s44, 2
      %s46 = scalar_select %p45, 0, %s44
      %s47 = ssub.s32 %s34, %s46
      %p48 = scmp.eq.s32.totalorder %s47, 0
      %s50 = sadd.s32 %s49, 1
      %s51 = scalar_select %p48, %s49, %s50
      %p54 = pneg %p48
      %p55 = scmp.eq.s32.totalorder %s27, 3
      %p56 = por %p54, %p55
      %p57 = scmp.ne.s32.totalorder %s49, %s52
      %p58 = scmp.eq.s32.totalorder %s27, 0
      %p59 = por %p57, %p58
      %p60 = scmp.ne.s32.totalorder %s49, %s52
      %p61 = scmp.eq.s32.totalorder %s32, 3
      %p62 = por %p60, %p61
      %p63 = scmp.ne.s32.totalorder %s52, %s53
      %p64 = scmp.eq.s32.totalorder %s32, 0
      %p65 = por %p63, %p64
      %p66 = scmp.ne.s32.totalorder %s52, %s53
      %p67 = scmp.eq.s32.totalorder %s33, 3
      %p68 = por %p66, %p67
      %p70 = scmp.ne.s32.totalorder %s53, %s69
      %p71 = scmp.eq.s32.totalorder %s33, 0
      %p72 = por %p70, %p71
      %s74 = sadd.s32 %s73, 1
      %p77 = scmp.eq.s32.totalorder %s27, 3
      %p78 = scmp.ne.s32.totalorder %s73, %s75
      %p79 = scmp.eq.s32.totalorder %s27, 0
      %p80 = por %p78, %p79
      %p81 = scmp.ne.s32.totalorder %s73, %s75
      %p82 = scmp.eq.s32.totalorder %s32, 3
      %p83 = por %p81, %p82
      %p84 = scmp.ne.s32.totalorder %s75, %s76
      %p85 = scmp.eq.s32.totalorder %s32, 0
      %p86 = por %p84, %p85
      %p87 = scmp.ne.s32.totalorder %s75, %s76
      %p88 = scmp.eq.s32.totalorder %s33, 3
      %p89 = por %p87, %p88
      %p91 = scmp.ne.s32.totalorder %s76, %s90
      %p92 = scmp.eq.s32.totalorder %s33, 0
      %p93 = por %p91, %p92
      %s95 = sadd.s32 %s94, 1
      %p98 = scmp.eq.s32.totalorder %s27, 3
      %p99 = scmp.ne.s32.totalorder %s94, %s96
      %p100 = scmp.eq.s32.totalorder %s27, 0
      %p101 = por %p99, %p100
      %p102 = scmp.ne.s32.totalorder %s94, %s96
      %p103 = scmp.eq.s32.totalorder %s32, 3
      %p104 = por %p102, %p103
      %p105 = scmp.ne.s32.totalorder %s96, %s97
      %p106 = scmp.eq.s32.totalorder %s32, 0
      %p107 = por %p105, %p106
      %p108 = scmp.ne.s32.totalorder %s96, %s97
      %p109 = scmp.eq.s32.totalorder %s33, 3
      %p110 = por %p108, %p109
      %p112 = scmp.ne.s32.totalorder %s97, %s111
      %p113 = scmp.eq.s32.totalorder %s33, 0
      %p114 = por %p112, %p113
      %s116 = sadd.s32 %s115, 1
      %p119 = scmp.eq.s32.totalorder %s27, 3
      %p120 = scmp.ne.s32.totalorder %s115, %s117
      %p121 = scmp.eq.s32.totalorder %s27, 0
      %p122 = por %p120, %p121
      %p123 = scmp.ne.s32.totalorder %s115, %s117
      %p124 = scmp.eq.s32.totalorder %s32, 3
      %p125 = por %p123, %p124
      %p126 = scmp.ne.s32.totalorder %s117, %s118
      %p127 = scmp.eq.s32.totalorder %s32, 0
      %p128 = por %p126, %p127
      %p129 = scmp.ne.s32.totalorder %s117, %s118
      %p130 = scmp.eq.s32.totalorder %s33, 3
      %p131 = por %p129, %p130
      %p133 = scmp.ne.s32.totalorder %s118, %s132
      %p134 = scmp.eq.s32.totalorder %s33, 0
      %p135 = por %p133, %p134
      %s137 = sadd.s32 %s136, 1
      %p140 = scmp.eq.s32.totalorder %s27, 3
      %p141 = scmp.ne.s32.totalorder %s136, %s138
      %p142 = scmp.eq.s32.totalorder %s27, 0
      %p143 = por %p141, %p142
      %p144 = scmp.ne.s32.totalorder %s136, %s138
      %p145 = scmp.eq.s32.totalorder %s32, 3
      %p146 = por %p144, %p145
      %p147 = scmp.ne.s32.totalorder %s138, %s139
      %p148 = scmp.eq.s32.totalorder %s32, 0
      %p149 = por %p147, %p148
      %p150 = scmp.ne.s32.totalorder %s138, %s139
      %p151 = scmp.eq.s32.totalorder %s33, 3
      %p152 = por %p150, %p151
      %p154 = scmp.ne.s32.totalorder %s139, %s153
      %p155 = scmp.eq.s32.totalorder %s33, 0
      %p156 = por %p154, %p155
      %s158 = sadd.s32 %s157, 1
      %p161 = scmp.eq.s32.totalorder %s27, 3
      %p162 = scmp.ne.s32.totalorder %s157, %s159
      %p163 = scmp.eq.s32.totalorder %s27, 0
      %p164 = por %p162, %p163
      %p165 = scmp.ne.s32.totalorder %s157, %s159
      %p166 = scmp.eq.s32.totalorder %s32, 3
      %p167 = por %p165, %p166
      %p168 = scmp.ne.s32.totalorder %s159, %s160
      %p169 = scmp.eq.s32.totalorder %s32, 0
      %p170 = por %p168, %p169
      %p171 = scmp.ne.s32.totalorder %s159, %s160
      %p172 = scmp.eq.s32.totalorder %s33, 3
      %p173 = por %p171, %p172
      %p175 = scmp.ne.s32.totalorder %s160, %s174
      %p176 = scmp.eq.s32.totalorder %s33, 0
      %p177 = por %p175, %p176
      %s179 = sadd.s32 %s178, 1
      %p182 = scmp.eq.s32.totalorder %s27, 3
      %p183 = scmp.ne.s32.totalorder %s178, %s180
      %p184 = scmp.eq.s32.totalorder %s27, 0
      %p185 = por %p183, %p184
      %p186 = scmp.ne.s32.totalorder %s178, %s180
      %p187 = scmp.eq.s32.totalorder %s32, 3
      %p188 = por %p186, %p187
      %p189 = scmp.ne.s32.totalorder %s180, %s181
      %p190 = scmp.eq.s32.totalorder %s32, 0
      %p191 = por %p189, %p190
      %p192 = scmp.ne.s32.totalorder %s180, %s181
      %p193 = scmp.eq.s32.totalorder %s33, 3
      %p194 = por %p192, %p193
      %p196 = scmp.ne.s32.totalorder %s181, %s195
      %p197 = scmp.eq.s32.totalorder %s33, 0
      %p198 = por %p196, %p197
      %s200 = sadd.s32 %s199, 1
      %p203 = scmp.eq.s32.totalorder %s27, 3
      %p204 = scmp.ne.s32.totalorder %s199, %s201
      %p205 = scmp.eq.s32.totalorder %s27, 0
      %p206 = por %p204, %p205
      %p207 = scmp.ne.s32.totalorder %s199, %s201
      %p208 = scmp.eq.s32.totalorder %s32, 3
      %p209 = por %p207, %p208
      %p210 = scmp.ne.s32.totalorder %s201, %s202
      %p211 = scmp.eq.s32.totalorder %s32, 0
      %p212 = por %p210, %p211
      %p213 = scmp.ne.s32.totalorder %s201, %s202
      %p214 = scmp.eq.s32.totalorder %s33, 3
      %p215 = por %p213, %p214
      %p217 = scmp.ne.s32.totalorder %s202, %s216
      %p218 = scmp.eq.s32.totalorder %s33, 0
      %p219 = por %p217, %p218
      %s221 = sadd.s32 %s220, 1
      %p224 = scmp.eq.s32.totalorder %s27, 3
      %p225 = scmp.ne.s32.totalorder %s220, %s222
      %p226 = scmp.eq.s32.totalorder %s27, 0
      %p227 = por %p225, %p226
      %p228 = scmp.ne.s32.totalorder %s220, %s222
      %p229 = scmp.eq.s32.totalorder %s32, 3
      %p230 = por %p228, %p229
      %p231 = scmp.ne.s32.totalorder %s222, %s223
      %p232 = scmp.eq.s32.totalorder %s32, 0
      %p233 = por %p231, %p232
      %p234 = scmp.ne.s32.totalorder %s222, %s223
      %p235 = scmp.eq.s32.totalorder %s33, 3
      %p236 = por %p234, %p235
      %p238 = scmp.ne.s32.totalorder %s223, %s237
      %p239 = scmp.eq.s32.totalorder %s33, 0
      %p240 = por %p238, %p239
      %s242 = sadd.s32 %s241, 1
      %p245 = scmp.eq.s32.totalorder %s27, 3
      %p246 = scmp.ne.s32.totalorder %s241, %s243
      %p247 = scmp.eq.s32.totalorder %s27, 0
      %p248 = por %p246, %p247
      %p249 = scmp.ne.s32.totalorder %s241, %s243
      %p250 = scmp.eq.s32.totalorder %s32, 3
      %p251 = por %p249, %p250
      %p252 = scmp.ne.s32.totalorder %s243, %s244
      %p253 = scmp.eq.s32.totalorder %s32, 0
      %p254 = por %p252, %p253
      %p255 = scmp.ne.s32.totalorder %s243, %s244
      %p256 = scmp.eq.s32.totalorder %s33, 3
      %p257 = por %p255, %p256
      %p259 = scmp.ne.s32.totalorder %s244, %s258
      %p260 = scmp.eq.s32.totalorder %s33, 0
      %p261 = por %p259, %p260
      %s263 = sadd.s32 %s262, 1
      %p266 = scmp.eq.s32.totalorder %s27, 3
      %p267 = scmp.ne.s32.totalorder %s262, %s264
      %p268 = scmp.eq.s32.totalorder %s27, 0
      %p269 = por %p267, %p268
      %p270 = scmp.ne.s32.totalorder %s262, %s264
      %p271 = scmp.eq.s32.totalorder %s32, 3
      %p272 = por %p270, %p271
      %p273 = scmp.ne.s32.totalorder %s264, %s265
      %p274 = scmp.eq.s32.totalorder %s32, 0
      %p275 = por %p273, %p274
      %p276 = scmp.ne.s32.totalorder %s264, %s265
      %p277 = scmp.eq.s32.totalorder %s33, 3
      %p278 = por %p276, %p277
      %p280 = scmp.ne.s32.totalorder %s265, %s279
      %p281 = scmp.eq.s32.totalorder %s33, 0
      %p282 = por %p280, %p281
      %s284 = sadd.s32 %s283, 1
      %p287 = scmp.eq.s32.totalorder %s27, 3
      %p288 = scmp.ne.s32.totalorder %s283, %s285
      %p289 = scmp.eq.s32.totalorder %s27, 0
      %p290 = por %p288, %p289
      %p291 = scmp.ne.s32.totalorder %s283, %s285
      %p292 = scmp.eq.s32.totalorder %s32, 3
      %p293 = por %p291, %p292
      %p294 = scmp.ne.s32.totalorder %s285, %s286
      %p295 = scmp.eq.s32.totalorder %s32, 0
      %p296 = por %p294, %p295
      %p297 = scmp.ne.s32.totalorder %s285, %s286
      %p298 = scmp.eq.s32.totalorder %s33, 3
      %p299 = por %p297, %p298
      %p301 = scmp.ne.s32.totalorder %s286, %s300
      %p302 = scmp.eq.s32.totalorder %s33, 0
      %p303 = por %p301, %p302
      %s304 = ssub.s32 %s34, %s46
      %p305 = scmp.eq.s32.totalorder %s304, 0
      %s307 = sadd.s32 %s306, 1
      %s308 = scalar_select %p305, %s306, %s307
      %p311 = pneg %p305
      %p312 = scmp.eq.s32.totalorder %s27, 3
      %p313 = por %p311, %p312
      %p314 = scmp.ne.s32.totalorder %s306, %s309
      %p315 = scmp.eq.s32.totalorder %s27, 0
      %p316 = por %p314, %p315
      %p317 = scmp.ne.s32.totalorder %s306, %s309
      %p318 = scmp.eq.s32.totalorder %s32, 3
      %p319 = por %p317, %p318
      %p320 = scmp.ne.s32.totalorder %s309, %s310
      %p321 = scmp.eq.s32.totalorder %s32, 0
      %p322 = por %p320, %p321
      %p323 = scmp.ne.s32.totalorder %s309, %s310
      %p324 = scmp.eq.s32.totalorder %s33, 3
      %p325 = por %p323, %p324
      %p327 = scmp.ne.s32.totalorder %s310, %s326
      %p328 = scmp.eq.s32.totalorder %s33, 0
      %p329 = por %p327, %p328
      %p330 = scmp.le.s32.totalorder 1, %s27
      %p331 = scmp.lt.s32.totalorder %s27, 5
      %p332 = pnand %p330, %p331
      %p333 = pneg %p332
      // Predicated region
      $region9: #{transformer_forward.1} parent=5 // pred_check
        _
      $region10: #{transformer_forward.1} parent=5 // pred_check_branch
        %335 = sbr.rel (%p332) target = $region12
      $region11: #{transformer_forward.1} parent=5 // pred_region
        %s336 = ssub.s32 %s27, 1
        // Predicated region
        $region13: #{transformer_forward.1} parent=11 // pred_check
          %p337 = pneg %p86
        $region14: #{transformer_forward.1} parent=11 // pred_check_branch
          %339 = sbr.rel (%p337) target = $region16
        $region15: #{transformer_forward.1} parent=11 // pred_region
          _
        $region16: #{transformer_forward.1} parent=11 // pred_fallthru
          _
        // Predicated region
        $region17: #{transformer_forward.1} parent=11 // pred_check
          %p340 = pneg %p107
        $region18: #{transformer_forward.1} parent=11 // pred_check_branch
          %342 = sbr.rel (%p340) target = $region20
        $region19: #{transformer_forward.1} parent=11 // pred_region
          %s344 = ssub.s32 32, 32
          %345 = vsyncadd [#allocation6], %s344
          %s346 = sshll.u32 [#allocation5], 4
          %s347 = int_to_ptr.vmem [resolvable:$true] %s346
          %352 = dma.hbm_to_vmem [thread:$0]  %s2, 32, %s347, [#allocation6], 16, 16, 1
        $region20: #{transformer_forward.1} parent=11 // pred_fallthru
          _
        // Predicated region
        $region21: #{transformer_forward.1} parent=11 // pred_check
          %p353 = pneg %p128
        $region22: #{transformer_forward.1} parent=11 // pred_check_branch
          %355 = sbr.rel (%p353) target = $region24
        $region23: #{transformer_forward.1} parent=11 // pred_region
          _
        $region24: #{transformer_forward.1} parent=11 // pred_fallthru
          _
        // Predicated region
        $region25: #{transformer_forward.1} parent=11 // pred_check
          %p356 = pneg %p149
        $region26: #{transformer_forward.1} parent=11 // pred_check_branch
          %358 = sbr.rel (%p356) target = $region28
        $region27: #{transformer_forward.1} parent=11 // pred_region
          _
        $region28: #{transformer_forward.1} parent=11 // pred_fallthru
          _
        // Predicated region
        $region29: #{transformer_forward.1} parent=11 // pred_check
          %p359 = pneg %p170
        $region30: #{transformer_forward.1} parent=11 // pred_check_branch
          %361 = sbr.rel (%p359) target = $region32
        $region31: #{transformer_forward.1} parent=11 // pred_region
          %s363 = ssub.s32 32, 32
          %364 = vsyncadd [#allocation6], %s363
          %s365 = sshll.u32 [#allocation7], 4
          %s366 = int_to_ptr.vmem [resolvable:$true] %s365
          %371 = dma.hbm_to_vmem [thread:$0]  %s5, 32, %s366, [#allocation6], 16, 16, 1
        $region32: #{transformer_forward.1} parent=11 // pred_fallthru
          _
        // Predicated region
        $region33: #{transformer_forward.1} parent=11 // pred_check
          %p372 = pneg %p191
        $region34: #{transformer_forward.1} parent=11 // pred_check_branch
          %374 = sbr.rel (%p372) target = $region36
        $region35: #{transformer_forward.1} parent=11 // pred_region
          %s376 = ssub.s32 32, 32
          %377 = vsyncadd [#allocation9], %s376
          %s378 = sshll.u32 [#allocation8], 4
          %s379 = int_to_ptr.vmem [resolvable:$true] %s378
          %384 = dma.hbm_to_vmem [thread:$0]  %s6, 32, %s379, [#allocation9], 16, 16, 1
        $region36: #{transformer_forward.1} parent=11 // pred_fallthru
          _
        // Predicated region
        $region37: #{transformer_forward.1} parent=11 // pred_check
          %p385 = pneg %p212
        $region38: #{transformer_forward.1} parent=11 // pred_check_branch
          %387 = sbr.rel (%p385) target = $region40
        $region39: #{transformer_forward.1} parent=11 // pred_region
          %s389 = ssub.s32 32, 32
          %390 = vsyncadd [#allocation9], %s389
          %s391 = sshll.u32 [#allocation10], 4
          %s392 = int_to_ptr.vmem [resolvable:$true] %s391
          %397 = dma.hbm_to_vmem [thread:$0]  %s7, 32, %s392, [#allocation9], 16, 16, 1
        $region40: #{transformer_forward.1} parent=11 // pred_fallthru
          _
        // Predicated region
        $region41: #{transformer_forward.1} parent=11 // pred_check
          %p398 = pneg %p233
        $region42: #{transformer_forward.1} parent=11 // pred_check_branch
          %400 = sbr.rel (%p398) target = $region44
        $region43: #{transformer_forward.1} parent=11 // pred_region
          _
        $region44: #{transformer_forward.1} parent=11 // pred_fallthru
          _
        // Predicated region
        $region45: #{transformer_forward.1} parent=11 // pred_check
          %p401 = pneg %p254
        $region46: #{transformer_forward.1} parent=11 // pred_check_branch
          %403 = sbr.rel (%p401) target = $region48
        $region47: #{transformer_forward.1} parent=11 // pred_region
          %s405 = ssub.s32 32, 32
          %406 = vsyncadd [#allocation12], %s405
          %s407 = sshll.u32 [#allocation11], 4
          %s408 = int_to_ptr.vmem [resolvable:$true] %s407
          %413 = dma.hbm_to_vmem [thread:$0]  %s9, 32, %s408, [#allocation12], 16, 16, 1
        $region48: #{transformer_forward.1} parent=11 // pred_fallthru
          _
        // Predicated region
        $region49: #{transformer_forward.1} parent=11 // pred_check
          %p414 = pneg %p275
        $region50: #{transformer_forward.1} parent=11 // pred_check_branch
          %416 = sbr.rel (%p414) target = $region52
        $region51: #{transformer_forward.1} parent=11 // pred_region
          _
        $region52: #{transformer_forward.1} parent=11 // pred_fallthru
          _
        // Predicated region
        $region53: #{transformer_forward.1} parent=11 // pred_check
          %p417 = pneg %p296
        $region54: #{transformer_forward.1} parent=11 // pred_check_branch
          %419 = sbr.rel (%p417) target = $region56
        $region55: #{transformer_forward.1} parent=11 // pred_region
          %s421 = ssub.s32 32, 32
          %422 = vsyncadd [#allocation12], %s421
          %s423 = sshll.u32 [#allocation13], 4
          %s424 = int_to_ptr.vmem [resolvable:$true] %s423
          %429 = dma.hbm_to_vmem [thread:$0]  %s11, 32, %s424, [#allocation12], 16, 16, 1
        $region56: #{transformer_forward.1} parent=11 // pred_fallthru
          _
      $region12: #{transformer_forward.1} parent=5 // pred_fallthru
        _
      %p430 = scmp.lt.s32.totalorder %s27, 4
      // Predicated region
      $region57: #{transformer_forward.1} parent=5 // pred_check
        %p431 = pneg %p430
      $region58: #{transformer_forward.1} parent=5 // pred_check_branch
        %433 = sbr.rel (%p431) target = $region60
      $region59: #{transformer_forward.1} parent=5 // pred_region
        // Predicated region
        $region61: #{transformer_forward.1} parent=59 // pred_check
          %p434 = pneg %p59
        $region62: #{transformer_forward.1} parent=59 // pred_check_branch
          %436 = sbr.rel (%p434) target = $region64
        $region63: #{transformer_forward.1} parent=59 // pred_region
          %s437 = sand.u32 %s49, 1
          %s438 = scalar_lea.sflag [#allocation3], %s437
          %s439 = sand.u32 %s49, 1
          %s440 = smul.addr %s439, 8
          %s441 = scalar_lea.vmem [#allocation2], %s440
          %s443 = ssub.s32 128, 128
          %444 = vsyncadd %s438, %s443
          %s445 = smul.addr %s34, 128
          %s446 = scalar_lea.hbm %s0, %s445
          %s448 = sshll.u32 %s441, 4
          %s449 = int_to_ptr.vmem [resolvable:$true] %s448
          %451 = dma.hbm_to_vmem [thread:$0]  %s446, 128, %s449, %s438
        $region64: #{transformer_forward.1} parent=59 // pred_fallthru
          _
      $region60: #{transformer_forward.1} parent=5 // pred_fallthru
        _
      %p452 = scmp.le.s32.totalorder 1, %s27
      %p453 = scmp.lt.s32.totalorder %s27, 5
      %p454 = pnand %p452, %p453
      %p455 = pneg %p454
      // Predicated region
      $region65: #{transformer_forward.1} parent=5 // pred_check
        _
      $region66: #{transformer_forward.1} parent=5 // pred_check_branch
        %457 = sbr.rel (%p454) target = $region68
      $region67: #{transformer_forward.1} parent=5 // pred_region
        %s458 = ssub.s32 %s27, 1
        %s459 = sand.u32 %s52, 1
        %s460 = scalar_lea.sflag [#allocation3], %s459
        %s461 = sand.u32 %s52, 1
        %s462 = smul.addr %s461, 8
        %s463 = scalar_lea.vmem [#allocation2], %s462
        // Predicated region
        $region69: #{transformer_forward.1} parent=67 // pred_check
          %p464 = pneg %p65
        $region70: #{transformer_forward.1} parent=67 // pred_check_branch
          %466 = sbr.rel (%p464) target = $region72
        $region71: #{transformer_forward.1} parent=67 // pred_region
          %467 = dma.done %s460, 128
        $region72: #{transformer_forward.1} parent=67 // pred_fallthru
          _
        // Predicated region
        $region73: #{transformer_forward.1} parent=67 // pred_check
          %p468 = pneg %p107
        $region74: #{transformer_forward.1} parent=67 // pred_check_branch
          %470 = sbr.rel (%p468) target = $region76
        $region75: #{transformer_forward.1} parent=67 // pred_region
          %471 = dma.done [#allocation6], 32
        $region76: #{transformer_forward.1} parent=67 // pred_fallthru
          _
        // Predicated region
        $region77: #{transformer_forward.1} parent=67 // pred_check
          %p472 = pneg %p170
        $region78: #{transformer_forward.1} parent=67 // pred_check_branch
          %474 = sbr.rel (%p472) target = $region80
        $region79: #{transformer_forward.1} parent=67 // pred_region
          %475 = dma.done [#allocation6], 32
        $region80: #{transformer_forward.1} parent=67 // pred_fallthru
          _
        // Predicated region
        $region81: #{transformer_forward.1} parent=67 // pred_check
          %p476 = pneg %p191
        $region82: #{transformer_forward.1} parent=67 // pred_check_branch
          %478 = sbr.rel (%p476) target = $region84
        $region83: #{transformer_forward.1} parent=67 // pred_region
          %479 = dma.done [#allocation9], 32
        $region84: #{transformer_forward.1} parent=67 // pred_fallthru
          _
        // Predicated region
        $region85: #{transformer_forward.1} parent=67 // pred_check
          %p480 = pneg %p212
        $region86: #{transformer_forward.1} parent=67 // pred_check_branch
          %482 = sbr.rel (%p480) target = $region88
        $region87: #{transformer_forward.1} parent=67 // pred_region
          %483 = dma.done [#allocation9], 32
        $region88: #{transformer_forward.1} parent=67 // pred_fallthru
          _
        // Predicated region
        $region89: #{transformer_forward.1} parent=67 // pred_check
          %p484 = pneg %p254
        $region90: #{transformer_forward.1} parent=67 // pred_check_branch
          %486 = sbr.rel (%p484) target = $region92
        $region91: #{transformer_forward.1} parent=67 // pred_region
          %487 = dma.done [#allocation12], 32
        $region92: #{transformer_forward.1} parent=67 // pred_fallthru
          _
        // Predicated region
        $region93: #{transformer_forward.1} parent=67 // pred_check
          %p488 = pneg %p296
        $region94: #{transformer_forward.1} parent=67 // pred_check_branch
          %490 = sbr.rel (%p488) target = $region96
        $region95: #{transformer_forward.1} parent=67 // pred_region
          %491 = dma.done [#allocation12], 32
        $region96: #{transformer_forward.1} parent=67 // pred_fallthru
          _
        %s492 = sand.u32 %s52, 1
        %s493 = scalar_lea.sflag [#allocation3], %s492
        %s494 = sand.u32 %s52, 1
        %s495 = smul.addr %s494, 8
        %s496 = scalar_lea.vmem [#allocation2], %s495
        %p497 = pneg %p65
        %p498 = pneg %p62
        %p499 = pneg %p86
        %p500 = pneg %p83
        %p501 = pneg %p107
        %p502 = pneg %p104
        %p503 = pneg %p128
        %p504 = pneg %p125
        %p505 = pneg %p149
        %p506 = pneg %p146
        %p507 = pneg %p170
        %p508 = pneg %p167
        %p509 = pneg %p191
        %p510 = pneg %p188
        %p511 = pneg %p212
        %p512 = pneg %p209
        %p513 = pneg %p233
        %p514 = pneg %p230
        %p515 = pneg %p254
        %p516 = pneg %p251
        %p517 = pneg %p275
        %p518 = pneg %p272
        %p519 = pneg %p296
        %p520 = pneg %p293
        %p521 = pneg %p322
        %p522 = pneg %p319
        %s523 = sand.u32 %s309, 1
        %s524 = scalar_lea.sflag [#allocation4], %s523
        %s525 = sand.u32 %s309, 1
        %s526 = smul.addr %s525, 8
        %s527 = scalar_lea.vmem [#allocation14], %s526
        %p529 = scmp.eq.s32.totalorder %s37, 0
        // Predicated region
        $region97: #{transformer_forward.1} parent=67 // pred_check
          %p530 = pneg %p529
        $region98: #{transformer_forward.1} parent=67 // pred_check_branch
          %532 = sbr.rel (%p530) target = $region100
        $region99: #{transformer_forward.1} parent=67 // pred_region
          %v533 = vld [vmem:[%s463] sm:$0xff]
          %vm534 = vcmask 261120
          %535 = vst.msk [vmem:[%s527] sm:$0xff] %vm534, %v533
        $region100: #{transformer_forward.1} parent=67 // pred_fallthru
          _
        %v536 = vld [vmem:[%s527] sm:$0xff]
        %s537 = scalar_lea.vmem %s1, %s37
        %v538 = vld [vmem:[%s537] sm:$0x1]
        %s539 = scalar_lea.vmem [#allocation5], %s37
        %v540 = vld [vmem:[%s539] sm:$0x1]
        %vm541 = vcmask 261120
        %v542 = vsel %vm541, %v536, 0.0
        %543 = vadd.xlane.f32.xlu0 %v542
        %v544 = vpop.xlane.xlu0 %543
        %v545 = vrcp.pop 32.0
        %v546 = vmul.f32 %v544, %v545
        %v547 = vsub.f32 %v536, %v546
        %v548 = vmul.f32 %v547, %v547
        %v549 = vsel %vm541, %v548, 0.0
        %550 = vadd.xlane.f32.xlu0 %v549
        %v551 = vpop.xlane.xlu0 %550
        %v552 = vmul.f32 %v551, %v545
        %v553 = vadd.f32 %v552, 1e-05
        %v554 = vrsqrt.pop %v553
        %v555 = vmul.f32 %v547, %v554
        %v557 = vlaneseq
        %v558 = vshrl.u32 %v557, 7
        %v559 = vsub.s32 0, %v558
        %v560 = vrot.slane %v538, %v559
        %v562 = vmul.f32 %v555, %v560
        %v564 = vlaneseq
        %v565 = vshrl.u32 %v564, 7
        %v566 = vsub.s32 0, %v565
        %v567 = vrot.slane %v540, %v566
        %v569 = vadd.f32 %v562, %v567
        %v570 = vpack.c.bf16 %v569, %v569
        %s571 = smul.u32 %s37, 4
        %s572 = smul.addr %s571, 4
        %s573 = scalar_lea.vmem %s3, %s572
        %v574 = vld [vmem:[%s573] sm:$0xf]
        %v575 = vld [vmem:[%s573 + $0x4] sm:$0xf]
        %v576 = vld [vmem:[%s573 + $0x8] sm:$0xf]
        %v577 = vld [vmem:[%s573 + $0xc] sm:$0xf]
        %v582 = vunpack.c.l.b16 %v574
        %v583 = vunpack.c.l.b16 %v575
        %v584 = vunpack.c.l.b16 %v576
        %v585 = vunpack.c.l.b16 %v577
        %v586 = vpack.c.b16 %v583, %v582
        %v587 = vpack.c.b16 %v585, %v584
        %v591 = vsel %vm541, %v570, 0
        %593 = vmatprep.subr.bf16.mxu0 0
        %594 = vmatpush1.bf16.msra.mxu0 %v586
        %595 = vmatprep.subr.bf16.mxu0 0
        %596 = vmatpush1.bf16.msra.mxu0 %v587
        %597 = vmatprep.subr.bf16.mxu0 0
        %598 = vmatpush1.bf16.msra.mxu0 0
        %599 = vmatprep.subr.bf16.mxu0 0
        %600 = vmatpush1.bf16.msra.mxu0 0
        %601 = vmatprep.subr.bf16.mxu0 0
        %602 = vmatpush1.bf16.msra.mxu0 0
        %603 = vmatprep.subr.bf16.mxu0 0
        %604 = vmatpush1.bf16.msra.mxu0 0
        %605 = vmatprep.subr.bf16.mxu0 0
        %606 = vmatpush1.bf16.msra.mxu0 0
        %607 = vmatprep.subr.bf16.mxu0 0
        %608 = vmatpush1.bf16.msra.mxu0 0
        %609 = vmatprep.subr.bf16.mxu0 0
        %610 = vmatpush1.bf16.msra.mxu0 0
        %611 = vmatprep.subr.bf16.mxu0 0
        %612 = vmatpush1.bf16.msra.mxu0 0
        %613 = vmatprep.subr.bf16.mxu0 0
        %614 = vmatpush1.bf16.msra.mxu0 0
        %615 = vmatprep.subr.bf16.mxu0 0
        %616 = vmatpush1.bf16.msra.mxu0 0
        %617 = vmatprep.subr.bf16.mxu0 0
        %618 = vmatpush1.bf16.msra.mxu0 0
        %619 = vmatprep.subr.bf16.mxu0 0
        %620 = vmatpush1.bf16.msra.mxu0 0
        %621 = vmatprep.subr.bf16.mxu0 0
        %622 = vmatpush1.bf16.msra.mxu0 0
        %623 = vmatprep.subr.bf16.mxu0 0
        %624 = vmatpush1.bf16.msra.mxu0 0
        %625 = vmatprep.mubr.bf16.mxu0 0
        %626 = vmatmul.mubr.bf16.gmra.mrb[0].mxu0 %v591
        %v627 = vpop.f32.mrb[0].mxu0
        %v628 = vadd.f32 0.0, %v627
        %v629 = vpop.f32.mrb[0].mxu0
        %v630 = vpop.f32.mrb[0].mxu0
        %v631 = vpop.f32.mrb[0].mxu0
        %632 = vdwg.mxu0
        %v633 = vpack.c.bf16 %v628, %v628
        %635 = vrot.lane.b32.xlu0 %v633, 96
        %v636 = vpop.permute.xlu0 %635
        %vm637 = vcmask 130048
        %v639 = vsel %vm637, %v633, 0
        %v642 = vsel %vm637, %v636, 0
        %644 = vmatprep.subr.bf16.mxu0 0
        %645 = vmatpush1.bf16.xpose.msra.mxu0 %v642
        %646 = vmatprep.subr.bf16.mxu0 0
        %647 = vmatpush1.bf16.xpose.msra.mxu0 0
        %648 = vmatprep.subr.bf16.mxu0 0
        %649 = vmatpush1.bf16.xpose.msra.mxu0 0
        %650 = vmatprep.subr.bf16.mxu0 0
        %651 = vmatpush1.bf16.xpose.msra.mxu0 0
        %652 = vmatprep.subr.bf16.mxu0 0
        %653 = vmatpush1.bf16.xpose.msra.mxu0 0
        %654 = vmatprep.subr.bf16.mxu0 0
        %655 = vmatpush1.bf16.xpose.msra.mxu0 0
        %656 = vmatprep.subr.bf16.mxu0 0
        %657 = vmatpush1.bf16.xpose.msra.mxu0 0
        %658 = vmatprep.subr.bf16.mxu0 0
        %659 = vmatpush1.bf16.xpose.msra.mxu0 0
        %660 = vmatprep.subr.bf16.mxu0 0
        %661 = vmatpush1.bf16.xpose.msra.mxu0 0
        %662 = vmatprep.subr.bf16.mxu0 0
        %663 = vmatpush1.bf16.xpose.msra.mxu0 0
        %664 = vmatprep.subr.bf16.mxu0 0
        %665 = vmatpush1.bf16.xpose.msra.mxu0 0
        %666 = vmatprep.subr.bf16.mxu0 0
        %667 = vmatpush1.bf16.xpose.msra.mxu0 0
        %668 = vmatprep.subr.bf16.mxu0 0
        %669 = vmatpush1.bf16.xpose.msra.mxu0 0
        %670 = vmatprep.subr.bf16.mxu0 0
        %671 = vmatpush1.bf16.xpose.msra.mxu0 0
        %672 = vmatprep.subr.bf16.mxu0 0
        %673 = vmatpush1.bf16.xpose.msra.mxu0 0
        %674 = vmatprep.subr.bf16.mxu0 0
        %675 = vmatpush1.bf16.xpose.msra.mxu0 0
        %676 = vmatprep.mubr.bf16.mxu0 0
        %677 = vmatmul.mubr.bf16.gmra.mrb[0].mxu0 %v639
        %v678 = vpop.f32.mrb[0].mxu0
        %v679 = vadd.f32 0.0, %v678
        %v680 = vpop.f32.mrb[0].mxu0
        %v681 = vpop.f32.mrb[0].mxu0
        %v682 = vpop.f32.mrb[0].mxu0
        %683 = vdwg.mxu0
        %vm684 = vcmask 64512
        %v685 = vsel %vm684, %v679, -inf
        %686 = vmax.xlane.f32.xlu0 %v685
        %v687 = vpop.xlane.xlu0 %686
        %v688 = vsub.f32 %v679, %v687
        %v689 = vmul.f32 %v688, 1.442695
        %v690 = vpow.pop %v689
        %v691 = vsel %vm684, %v690, 0.0
        %692 = vadd.xlane.f32.xlu0 %v691
        %v693 = vpop.xlane.xlu0 %692
        %v694 = vrcp.pop %v693
        %v695 = vmul.f32 %v690, %v694
        %v696 = vpack.c.bf16 %v695, %v695
        %697 = vrot.lane.b32.xlu0 %v633, 64
        %v698 = vpop.permute.xlu0 %697
        %v700 = vsel %vm684, %v696, 0
        %vm702 = vcmask 1043456
        %v704 = vsel %vm702, %v698, 0
        %706 = vmatprep.subr.bf16.mxu0 0
        %707 = vmatpush1.bf16.msra.mxu0 %v704
        %708 = vmatprep.subr.bf16.mxu0 0
        %709 = vmatpush1.bf16.msra.mxu0 0
        %710 = vmatprep.subr.bf16.mxu0 0
        %711 = vmatpush1.bf16.msra.mxu0 0
        %712 = vmatprep.subr.bf16.mxu0 0
        %713 = vmatpush1.bf16.msra.mxu0 0
        %714 = vmatprep.subr.bf16.mxu0 0
        %715 = vmatpush1.bf16.msra.mxu0 0
        %716 = vmatprep.subr.bf16.mxu0 0
        %717 = vmatpush1.bf16.msra.mxu0 0
        %718 = vmatprep.subr.bf16.mxu0 0
        %719 = vmatpush1.bf16.msra.mxu0 0
        %720 = vmatprep.subr.bf16.mxu0 0
        %721 = vmatpush1.bf16.msra.mxu0 0
        %722 = vmatprep.subr.bf16.mxu0 0
        %723 = vmatpush1.bf16.msra.mxu0 0
        %724 = vmatprep.subr.bf16.mxu0 0
        %725 = vmatpush1.bf16.msra.mxu0 0
        %726 = vmatprep.subr.bf16.mxu0 0
        %727 = vmatpush1.bf16.msra.mxu0 0
        %728 = vmatprep.subr.bf16.mxu0 0
        %729 = vmatpush1.bf16.msra.mxu0 0
        %730 = vmatprep.subr.bf16.mxu0 0
        %731 = vmatpush1.bf16.msra.mxu0 0
        %732 = vmatprep.subr.bf16.mxu0 0
        %733 = vmatpush1.bf16.msra.mxu0 0
        %734 = vmatprep.subr.bf16.mxu0 0
        %735 = vmatpush1.bf16.msra.mxu0 0
        %736 = vmatprep.subr.bf16.mxu0 0
        %737 = vmatpush1.bf16.msra.mxu0 0
        %738 = vmatprep.mubr.bf16.mxu0 0
        %739 = vmatmul.mubr.bf16.gmra.mrb[0].mxu0 %v700
        %v740 = vpop.f32.mrb[0].mxu0
        %v741 = vadd.f32 0.0, %v740
        %v742 = vpop.f32.mrb[0].mxu0
        %v743 = vpop.f32.mrb[0].mxu0
        %v744 = vpop.f32.mrb[0].mxu0
        %745 = vdwg.mxu0
        %746 = vrot.lane.b32.xlu0 %v633, 112
        %v747 = vpop.permute.xlu0 %746
        %748 = vrot.lane.b32.xlu0 %v633, 80
        %v749 = vpop.permute.xlu0 %748
        %v751 = vsel %vm637, %v747, 0
        %v754 = vsel %vm637, %v749, 0
        %756 = vmatprep.subr.bf16.mxu0 0
        %757 = vmatpush1.bf16.xpose.msra.mxu0 %v754
        %758 = vmatprep.subr.bf16.mxu0 0
        %759 = vmatpush1.bf16.xpose.msra.mxu0 0
        %760 = vmatprep.subr.bf16.mxu0 0
        %761 = vmatpush1.bf16.xpose.msra.mxu0 0
        %762 = vmatprep.subr.bf16.mxu0 0
        %763 = vmatpush1.bf16.xpose.msra.mxu0 0
        %764 = vmatprep.subr.bf16.mxu0 0
        %765 = vmatpush1.bf16.xpose.msra.mxu0 0
        %766 = vmatprep.subr.bf16.mxu0 0
        %767 = vmatpush1.bf16.xpose.msra.mxu0 0
        %768 = vmatprep.subr.bf16.mxu0 0
        %769 = vmatpush1.bf16.xpose.msra.mxu0 0
        %770 = vmatprep.subr.bf16.mxu0 0
        %771 = vmatpush1.bf16.xpose.msra.mxu0 0
        %772 = vmatprep.subr.bf16.mxu0 0
        %773 = vmatpush1.bf16.xpose.msra.mxu0 0
        %774 = vmatprep.subr.bf16.mxu0 0
        %775 = vmatpush1.bf16.xpose.msra.mxu0 0
        %776 = vmatprep.subr.bf16.mxu0 0
        %777 = vmatpush1.bf16.xpose.msra.mxu0 0
        %778 = vmatprep.subr.bf16.mxu0 0
        %779 = vmatpush1.bf16.xpose.msra.mxu0 0
        %780 = vmatprep.subr.bf16.mxu0 0
        %781 = vmatpush1.bf16.xpose.msra.mxu0 0
        %782 = vmatprep.subr.bf16.mxu0 0
        %783 = vmatpush1.bf16.xpose.msra.mxu0 0
        %784 = vmatprep.subr.bf16.mxu0 0
        %785 = vmatpush1.bf16.xpose.msra.mxu0 0
        %786 = vmatprep.subr.bf16.mxu0 0
        %787 = vmatpush1.bf16.xpose.msra.mxu0 0
        %788 = vmatprep.mubr.bf16.mxu0 0
        %789 = vmatmul.mubr.bf16.gmra.mrb[0].mxu0 %v751
        %v790 = vpop.f32.mrb[0].mxu0
        %v791 = vadd.f32 0.0, %v790
        %v792 = vpop.f32.mrb[0].mxu0
        %v793 = vpop.f32.mrb[0].mxu0
        %v794 = vpop.f32.mrb[0].mxu0
        %795 = vdwg.mxu0
        %v796 = vsel %vm684, %v791, -inf
        %797 = vmax.xlane.f32.xlu0 %v796
        %v798 = vpop.xlane.xlu0 %797
        %v799 = vsub.f32 %v791, %v798
        %v800 = vmul.f32 %v799, 1.442695
        %v801 = vpow.pop %v800
        %v802 = vsel %vm684, %v801, 0.0
        %803 = vadd.xlane.f32.xlu0 %v802
        %v804 = vpop.xlane.xlu0 %803
        %v805 = vrcp.pop %v804
        %v806 = vmul.f32 %v801, %v805
        %v807 = vpack.c.bf16 %v806, %v806
        %808 = vrot.lane.b32.xlu0 %v633, 48
        %v809 = vpop.permute.xlu0 %808
        %v811 = vsel %vm684, %v807, 0
        %v814 = vsel %vm702, %v809, 0
        %816 = vmatprep.subr.bf16.mxu0 0
        %817 = vmatpush1.bf16.msra.mxu0 %v814
        %818 = vmatprep.subr.bf16.mxu0 0
        %819 = vmatpush1.bf16.msra.mxu0 0
        %820 = vmatprep.subr.bf16.mxu0 0
        %821 = vmatpush1.bf16.msra.mxu0 0
        %822 = vmatprep.subr.bf16.mxu0 0
        %823 = vmatpush1.bf16.msra.mxu0 0
        %824 = vmatprep.subr.bf16.mxu0 0
        %825 = vmatpush1.bf16.msra.mxu0 0
        %826 = vmatprep.subr.bf16.mxu0 0
        %827 = vmatpush1.bf16.msra.mxu0 0
        %828 = vmatprep.subr.bf16.mxu0 0
        %829 = vmatpush1.bf16.msra.mxu0 0
        %830 = vmatprep.subr.bf16.mxu0 0
        %831 = vmatpush1.bf16.msra.mxu0 0
        %832 = vmatprep.subr.bf16.mxu0 0
        %833 = vmatpush1.bf16.msra.mxu0 0
        %834 = vmatprep.subr.bf16.mxu0 0
        %835 = vmatpush1.bf16.msra.mxu0 0
        %836 = vmatprep.subr.bf16.mxu0 0
        %837 = vmatpush1.bf16.msra.mxu0 0
        %838 = vmatprep.subr.bf16.mxu0 0
        %839 = vmatpush1.bf16.msra.mxu0 0
        %840 = vmatprep.subr.bf16.mxu0 0
        %841 = vmatpush1.bf16.msra.mxu0 0
        %842 = vmatprep.subr.bf16.mxu0 0
        %843 = vmatpush1.bf16.msra.mxu0 0
        %844 = vmatprep.subr.bf16.mxu0 0
        %845 = vmatpush1.bf16.msra.mxu0 0
        %846 = vmatprep.subr.bf16.mxu0 0
        %847 = vmatpush1.bf16.msra.mxu0 0
        %848 = vmatprep.mubr.bf16.mxu0 0
        %849 = vmatmul.mubr.bf16.gmra.mrb[0].mxu0 %v811
        %v850 = vpop.f32.mrb[0].mxu0
        %v851 = vadd.f32 0.0, %v850
        %v852 = vpop.f32.mrb[0].mxu0
        %v853 = vpop.f32.mrb[0].mxu0
        %v854 = vpop.f32.mrb[0].mxu0
        %855 = vdwg.mxu0
        %857 = vrot.lane.b32.xlu0 %v851, 16
        %v858 = vpop.permute.xlu0 %857
        %v860 = vsel %vm637, %v741, %v858
        %v861 = vpack.c.bf16 %v860, %v860
        %s862 = smul.addr %s571, 4
        %s863 = scalar_lea.vmem %s4, %s862
        %v864 = vld [vmem:[%s863] sm:$0xf]
        %v865 = vld [vmem:[%s863 + $0x4] sm:$0xf]
        %v866 = vld [vmem:[%s863 + $0x8] sm:$0xf]
        %v867 = vld [vmem:[%s863 + $0xc] sm:$0xf]
        %s868 = scalar_lea.vmem [#allocation7], %s37
        %v869 = vld [vmem:[%s868] sm:$0x1]
        %v871 = vlaneseq
        %v872 = vshrl.u32 %v871, 7
        %v873 = vsub.s32 0, %v872
        %v874 = vrot.slane %v869, %v873
        %v880 = vunpack.c.l.b16 %v864
        %v881 = vunpack.c.l.b16 %v865
        %v882 = vunpack.c.l.b16 %v866
        %v883 = vunpack.c.l.b16 %v867
        %v884 = vpack.c.b16 %v881, %v880
        %v885 = vpack.c.b16 %v883, %v882
        %v889 = vsel %vm541, %v861, 0
        %891 = vmatprep.subr.bf16.mxu0 0
        %892 = vmatpush1.bf16.msra.mxu0 %v884
        %893 = vmatprep.subr.bf16.mxu0 0
        %894 = vmatpush1.bf16.msra.mxu0 %v885
        %895 = vmatprep.subr.bf16.mxu0 0
        %896 = vmatpush1.bf16.msra.mxu0 0
        %897 = vmatprep.subr.bf16.mxu0 0
        %898 = vmatpush1.bf16.msra.mxu0 0
        %899 = vmatprep.subr.bf16.mxu0 0
        %900 = vmatpush1.bf16.msra.mxu0 0
        %901 = vmatprep.subr.bf16.mxu0 0
        %902 = vmatpush1.bf16.msra.mxu0 0
        %903 = vmatprep.subr.bf16.mxu0 0
        %904 = vmatpush1.bf16.msra.mxu0 0
        %905 = vmatprep.subr.bf16.mxu0 0
        %906 = vmatpush1.bf16.msra.mxu0 0
        %907 = vmatprep.subr.bf16.mxu0 0
        %908 = vmatpush1.bf16.msra.mxu0 0
        %909 = vmatprep.subr.bf16.mxu0 0
        %910 = vmatpush1.bf16.msra.mxu0 0
        %911 = vmatprep.subr.bf16.mxu0 0
        %912 = vmatpush1.bf16.msra.mxu0 0
        %913 = vmatprep.subr.bf16.mxu0 0
        %914 = vmatpush1.bf16.msra.mxu0 0
        %915 = vmatprep.subr.bf16.mxu0 0
        %916 = vmatpush1.bf16.msra.mxu0 0
        %917 = vmatprep.subr.bf16.mxu0 0
        %918 = vmatpush1.bf16.msra.mxu0 0
        %919 = vmatprep.subr.bf16.mxu0 0
        %920 = vmatpush1.bf16.msra.mxu0 0
        %921 = vmatprep.subr.bf16.mxu0 0
        %922 = vmatpush1.bf16.msra.mxu0 0
        %923 = vmatprep.mubr.bf16.mxu0 0
        %924 = vmatmul.mubr.bf16.gmra.mrb[0].mxu0 %v889
        %v925 = vpop.f32.mrb[0].mxu0
        %v926 = vadd.f32 %v874, %v925
        %v927 = vpop.f32.mrb[0].mxu0
        %v928 = vpop.f32.mrb[0].mxu0
        %v929 = vpop.f32.mrb[0].mxu0
        %930 = vdwg.mxu0
        %v931 = vadd.f32 %v536, %v926
        %s932 = scalar_lea.vmem [#allocation8], %s37
        %v933 = vld [vmem:[%s932] sm:$0x1]
        %s934 = scalar_lea.vmem [#allocation10], %s37
        %v935 = vld [vmem:[%s934] sm:$0x1]
        %v936 = vsel %vm541, %v931, 0.0
        %937 = vadd.xlane.f32.xlu0 %v936
        %v938 = vpop.xlane.xlu0 %937
        %v939 = vmul.f32 %v938, %v545
        %v940 = vsub.f32 %v931, %v939
        %v941 = vmul.f32 %v940, %v940
        %v942 = vsel %vm541, %v941, 0.0
        %943 = vadd.xlane.f32.xlu0 %v942
        %v944 = vpop.xlane.xlu0 %943
        %v945 = vmul.f32 %v944, %v545
        %v946 = vadd.f32 %v945, 1e-05
        %v947 = vrsqrt.pop %v946
        %v948 = vmul.f32 %v940, %v947
        %v950 = vlaneseq
        %v951 = vshrl.u32 %v950, 7
        %v952 = vsub.s32 0, %v951
        %v953 = vrot.slane %v933, %v952
        %v955 = vmul.f32 %v948, %v953
        %v957 = vlaneseq
        %v958 = vshrl.u32 %v957, 7
        %v959 = vsub.s32 0, %v958
        %v960 = vrot.slane %v935, %v959
        %v962 = vadd.f32 %v955, %v960
        %v963 = vpack.c.bf16 %v962, %v962
        %s964 = smul.addr %s571, 4
        %s965 = scalar_lea.vmem %s8, %s964
        %v966 = vld [vmem:[%s965] sm:$0xf]
        %v967 = vld [vmem:[%s965 + $0x4] sm:$0xf]
        %v968 = vld [vmem:[%s965 + $0x8] sm:$0xf]
        %v969 = vld [vmem:[%s965 + $0xc] sm:$0xf]
        %s970 = scalar_lea.vmem [#allocation11], %s37
        %v971 = vld [vmem:[%s970] sm:$0x1]
        %v973 = vlaneseq
        %v974 = vshrl.u32 %v973, 7
        %v975 = vsub.s32 0, %v974
        %v976 = vrot.slane %v971, %v975
        %v982 = vunpack.c.l.b16 %v966
        %v983 = vunpack.c.l.b16 %v967
        %v984 = vunpack.c.l.b16 %v968
        %v985 = vunpack.c.l.b16 %v969
        %v986 = vpack.c.b16 %v983, %v982
        %v987 = vpack.c.b16 %v985, %v984
        %v991 = vsel %vm541, %v963, 0
        %993 = vmatprep.subr.bf16.mxu0 0
        %994 = vmatpush1.bf16.msra.mxu0 %v986
        %995 = vmatprep.subr.bf16.mxu0 0
        %996 = vmatpush1.bf16.msra.mxu0 %v987
        %997 = vmatprep.subr.bf16.mxu0 0
        %998 = vmatpush1.bf16.msra.mxu0 0
        %999 = vmatprep.subr.bf16.mxu0 0
        %1000 = vmatpush1.bf16.msra.mxu0 0
        %1001 = vmatprep.subr.bf16.mxu0 0
        %1002 = vmatpush1.bf16.msra.mxu0 0
        %1003 = vmatprep.subr.bf16.mxu0 0
        %1004 = vmatpush1.bf16.msra.mxu0 0
        %1005 = vmatprep.subr.bf16.mxu0 0
        %1006 = vmatpush1.bf16.msra.mxu0 0
        %1007 = vmatprep.subr.bf16.mxu0 0
        %1008 = vmatpush1.bf16.msra.mxu0 0
        %1009 = vmatprep.subr.bf16.mxu0 0
        %1010 = vmatpush1.bf16.msra.mxu0 0
        %1011 = vmatprep.subr.bf16.mxu0 0
        %1012 = vmatpush1.bf16.msra.mxu0 0
        %1013 = vmatprep.subr.bf16.mxu0 0
        %1014 = vmatpush1.bf16.msra.mxu0 0
        %1015 = vmatprep.subr.bf16.mxu0 0
        %1016 = vmatpush1.bf16.msra.mxu0 0
        %1017 = vmatprep.subr.bf16.mxu0 0
        %1018 = vmatpush1.bf16.msra.mxu0 0
        %1019 = vmatprep.subr.bf16.mxu0 0
        %1020 = vmatpush1.bf16.msra.mxu0 0
        %1021 = vmatprep.subr.bf16.mxu0 0
        %1022 = vmatpush1.bf16.msra.mxu0 0
        %1023 = vmatprep.subr.bf16.mxu0 0
        %1024 = vmatpush1.bf16.msra.mxu0 0
        %1025 = vmatprep.mubr.bf16.mxu0 0
        %1026 = vmatmul.mubr.bf16.gmra.mrb[0].mxu0 %v991
        %v1027 = vpop.f32.mrb[0].mxu0
        %v1028 = vadd.f32 %v976, %v1027
        %v1029 = vpop.f32.mrb[0].mxu0
        %v1030 = vpop.f32.mrb[0].mxu0
        %v1031 = vpop.f32.mrb[0].mxu0
        %1032 = vdwg.mxu0
        %v1033 = vmul.f32 %v1028, 0.5
        %v1034 = vmul.f32 %v1028, 0.70710677
        %v1035 = verf.f32.pop %v1034
        %v1036 = vadd.f32 %v1035, 1.0
        %v1037 = vmul.f32 %v1033, %v1036
        %v1038 = vpack.c.bf16 %v1037, %v1037
        %s1039 = smul.u32 %s37, 8
        %s1040 = smul.addr %s1039, 4
        %s1041 = scalar_lea.vmem %s10, %s1040
        %v1042 = vld [vmem:[%s1041] sm:$0xf]
        %v1043 = vld [vmem:[%s1041 + $0x4] sm:$0xf]
        %v1044 = vld [vmem:[%s1041 + $0x8] sm:$0xf]
        %v1045 = vld [vmem:[%s1041 + $0xc] sm:$0xf]
        %v1046 = vld [vmem:[%s1041 + $0x10] sm:$0xf]
        %v1047 = vld [vmem:[%s1041 + $0x14] sm:$0xf]
        %v1048 = vld [vmem:[%s1041 + $0x18] sm:$0xf]
        %v1049 = vld [vmem:[%s1041 + $0x1c] sm:$0xf]
        %s1050 = scalar_lea.vmem [#allocation13], %s37
        %v1051 = vld [vmem:[%s1050] sm:$0x1]
        %v1053 = vlaneseq
        %v1054 = vshrl.u32 %v1053, 7
        %v1055 = vsub.s32 0, %v1054
        %v1056 = vrot.slane %v1051, %v1055
        %v1066 = vunpack.c.l.b16 %v1042
        %v1067 = vunpack.c.l.b16 %v1043
        %v1068 = vunpack.c.l.b16 %v1044
        %v1069 = vunpack.c.l.b16 %v1045
        %v1070 = vunpack.c.l.b16 %v1046
        %v1071 = vunpack.c.l.b16 %v1047
        %v1072 = vunpack.c.l.b16 %v1048
        %v1073 = vunpack.c.l.b16 %v1049
        %v1074 = vpack.c.b16 %v1067, %v1066
        %v1075 = vpack.c.b16 %v1069, %v1068
        %v1076 = vpack.c.b16 %v1071, %v1070
        %v1077 = vpack.c.b16 %v1073, %v1072
        %vm1082 = vcmask 523264
        %v1084 = vsel %vm1082, %v1038, 0
        %1086 = vmatprep.subr.bf16.mxu0 0
        %1087 = vmatpush1.bf16.msra.mxu0 %v1074
        %1088 = vmatprep.subr.bf16.mxu0 0
        %1089 = vmatpush1.bf16.msra.mxu0 %v1075
        %1090 = vmatprep.subr.bf16.mxu0 0
        %1091 = vmatpush1.bf16.msra.mxu0 %v1076
        %1092 = vmatprep.subr.bf16.mxu0 0
        %1093 = vmatpush1.bf16.msra.mxu0 %v1077
        %1094 = vmatprep.subr.bf16.mxu0 0
        %1095 = vmatpush1.bf16.msra.mxu0 0
        %1096 = vmatprep.subr.bf16.mxu0 0
        %1097 = vmatpush1.bf16.msra.mxu0 0
        %1098 = vmatprep.subr.bf16.mxu0 0
        %1099 = vmatpush1.bf16.msra.mxu0 0
        %1100 = vmatprep.subr.bf16.mxu0 0
        %1101 = vmatpush1.bf16.msra.mxu0 0
        %1102 = vmatprep.subr.bf16.mxu0 0
        %1103 = vmatpush1.bf16.msra.mxu0 0
        %1104 = vmatprep.subr.bf16.mxu0 0
        %1105 = vmatpush1.bf16.msra.mxu0 0
        %1106 = vmatprep.subr.bf16.mxu0 0
        %1107 = vmatpush1.bf16.msra.mxu0 0
        %1108 = vmatprep.subr.bf16.mxu0 0
        %1109 = vmatpush1.bf16.msra.mxu0 0
        %1110 = vmatprep.subr.bf16.mxu0 0
        %1111 = vmatpush1.bf16.msra.mxu0 0
        %1112 = vmatprep.subr.bf16.mxu0 0
        %1113 = vmatpush1.bf16.msra.mxu0 0
        %1114 = vmatprep.subr.bf16.mxu0 0
        %1115 = vmatpush1.bf16.msra.mxu0 0
        %1116 = vmatprep.subr.bf16.mxu0 0
        %1117 = vmatpush1.bf16.msra.mxu0 0
        %1118 = vmatprep.mubr.bf16.mxu0 0
        %1119 = vmatmul.mubr.bf16.gmra.mrb[0].mxu0 %v1084
        %v1120 = vpop.f32.mrb[0].mxu0
        %v1121 = vadd.f32 %v1056, %v1120
        %v1122 = vpop.f32.mrb[0].mxu0
        %v1123 = vpop.f32.mrb[0].mxu0
        %v1124 = vpop.f32.mrb[0].mxu0
        %1125 = vdwg.mxu0
        %v1126 = vadd.f32 %v931, %v1121
        %1127 = vst.msk [vmem:[%s527] sm:$0xff] %vm541, %v1126
        %s1128 = sand.u32 %s309, 1
        %s1129 = scalar_lea.sflag [#allocation4], %s1128
        %s1130 = sand.u32 %s309, 1
        %s1131 = smul.addr %s1130, 8
        %s1132 = scalar_lea.vmem [#allocation14], %s1131
        // Predicated region
        $region101: #{transformer_forward.1} parent=67 // pred_check
          %p1133 = pneg %p319
        $region102: #{transformer_forward.1} parent=67 // pred_check_branch
          %1135 = sbr.rel (%p1133) target = $region104
        $region103: #{transformer_forward.1} parent=67 // pred_region
          %s1137 = ssub.s32 128, 128
          %1138 = vsyncadd %s1129, %s1137
          %s1139 = smul.addr %s36, 128
          %s1140 = scalar_lea.hbm %s12, %s1139
          %s1142 = sshll.u32 %s1132, 4
          %s1143 = int_to_ptr.vmem [resolvable:$true] %s1142
          %1145 = dma.vmem_to_hbm [thread:$0]  %s1143, 128, %s1140, %s1129
        $region104: #{transformer_forward.1} parent=67 // pred_fallthru
          _
      $region68: #{transformer_forward.1} parent=5 // pred_fallthru
        _
      %p1146 = scmp.le.s32.totalorder 2, %s27
      // Predicated region
      $region105: #{transformer_forward.1} parent=5 // pred_check
        %p1147 = pneg %p1146
      $region106: #{transformer_forward.1} parent=5 // pred_check_branch
        %1149 = sbr.rel (%p1147) target = $region108
      $region107: #{transformer_forward.1} parent=5 // pred_region
        %s1150 = ssub.s32 %s27, 2
        // Predicated region
        $region109: #{transformer_forward.1} parent=107 // pred_check
          %p1151 = pneg %p325
        $region110: #{transformer_forward.1} parent=107 // pred_check_branch
          %1153 = sbr.rel (%p1151) target = $region112
        $region111: #{transformer_forward.1} parent=107 // pred_region
          %s1154 = sand.u32 %s310, 1
          %s1155 = scalar_lea.sflag [#allocation4], %s1154
          %s1156 = sand.u32 %s310, 1
          %s1157 = smul.addr %s1156, 8
          %s1158 = scalar_lea.vmem [#allocation14], %s1157
          %1159 = dma.done %s1155, 128
        $region112: #{transformer_forward.1} parent=107 // pred_fallthru
          _
      $region108: #{transformer_forward.1} parent=5 // pred_fallthru
        _
    $region6: #{transformer_forward.1} parent=1 // loop_footer
      %s31 = sadd.s32 1, %s27
    $region7: #{transformer_forward.1} parent=1 // loop_footer_branch
      %26 = sbr.rel target = $region3
    $region8: #{transformer_forward.1} parent=1 // loop_exit
      _
    %1160 = vsyncpa [#allocation3], 1
    %s1161 = scalar_lea.sflag [#allocation3], 1
    %1162 = vsyncpa %s1161, 1
    %1163 = vsyncpa [#allocation6], 1
    %1164 = vsyncpa [#allocation9], 1
    %1165 = vsyncpa [#allocation12], 1
    %1166 = vsyncpa [#allocation4], 1
    %s1167 = scalar_lea.sflag [#allocation4], 1
    %1168 = vsyncpa %s1167, 1

</llo_original>
